<compile_context>
chip_gen: v6e
topology: v6e:2x2x1
jax: 0.10.0
libtpu: 0.0.40
codegen_flags: <defaults>
</compile_context>

<pallas_src>
import jax
import jax.numpy as jnp
from jax import lax
from jax.experimental import pallas as pl
from jax.experimental.pallas import tpu as pltpu

# ---- hyperparameters (mirroring the PyTorch module's globals) ---------------
VOCAB = 50          # len(ws)
EMBED_DIM = 100     # embedd_dim  (GRU input_size=100)
HIDDEN = 32         # hidden_size
BATCH = 2           # batch_size
MAXLEN = 8          # maxlen
EPS = 1e-5          # LayerNorm default eps
H3 = 3 * HIDDEN     # per-direction fused gate width (r, z, n)
GPAD = 128          # padded (lane-aligned) width of one fused gate block
NG3 = 3 * GPAD      # total fused gate width  [r | z | n], each [fwd|bwd|pad]
MISC_ROWS = max(8, 5 + BATCH)


# ---- fully fused forward kernel ---------------------------------------------
def fused_forward_kernel(tok_ref, emb_ref, ln_ref, wih_ref, whh_ref, misc_ref,
                         o_ref):
    TB = MAXLEN * BATCH
    H2 = 2 * HIDDEN

    # -- embedding lookup as a one-hot matmul (exact, MXU-friendly gather) --
    tok = tok_ref[...]                                            # (T*B? no: B*T, 1) int32, batch-major rows b*T+t
    onehot = (tok == lax.broadcasted_iota(jnp.int32, (TB, VOCAB), 1)
              ).astype(jnp.float32)                               # (B*T, V)
    x = jnp.dot(onehot, emb_ref[...],
                preferred_element_type=jnp.float32)               # (B*T, D)

    # -- LayerNorm with normalized_shape=[B, T, D]: stats over the WHOLE tensor,
    #    computed in a single pass --
    n_elems = TB * EMBED_DIM
    s1 = jnp.sum(x)
    s2 = jnp.sum(x * x)
    mean = s1 / n_elems
    var = s2 / n_elems - mean * mean
    ln = ln_ref[...]                                              # (2*B*T, D): rows 0:TB weight, TB:2TB bias
    x = (x - mean) * lax.rsqrt(var + EPS) * ln[0:TB, :] + ln[TB:2 * TB, :]

    misc = misc_ref[...]                                          # (MISC_ROWS, 3*GPAD) f32

    # -- fused bidirectional input projection: both directions, all gates, one
    #    matmul; b_ih (all gates) and b_hh (r,z) folded into misc row 0 --
    gx_all = jnp.dot(x, wih_ref[...],
                     preferred_element_type=jnp.float32) + misc[0:1, :]   # (B*T, 3*GPAD)

    # Per-step gate inputs: forward lanes take the batch rows at time s,
    # backward lanes the rows at time T-1-s.  All of this row shuffling is
    # independent of h, i.e. off the serial recurrence chain.
    fsel = misc[5:5 + BATCH, :] > 0.5                             # (B, 3*GPAD) forward-lane mask
    row_pairs = [jnp.concatenate(
        [gx_all[b * MAXLEN + t: b * MAXLEN + t + 1, :] for b in range(BATCH)],
        axis=0) for t in range(MAXLEN)]                           # each (B, 3*GPAD)
    gx_steps = [jnp.where(fsel, row_pairs[s], row_pairs[MAXLEN - 1 - s])
                for s in range(MAXLEN)]

    # -- bidirectional single-layer GRU as ONE fused recurrence over
    #    h = [h_fwd | h_bwd], block-diagonal Whh, bf16 MXU operands --
    whh = whh_ref[...]                                            # (2H, 3*GPAD) bf16
    bhh_n = misc[1:2, 0:H2]                                       # (1, 2H) — stays inside r-scaled term
    h = jnp.zeros((BATCH, H2), jnp.float32)
    for s in range(MAXLEN):
        gx = gx_steps[s]                                          # (B, 3*GPAD)
        gh = jnp.dot(h.astype(jnp.bfloat16), whh,
                     preferred_element_type=jnp.float32)          # (B, 3*GPAD)
        # all slices start on a 128-lane boundary and read only the first 2H lanes
        r = jax.nn.sigmoid(gx[:, 0:H2] + gh[:, 0:H2])
        z = jax.nn.sigmoid(gx[:, GPAD:GPAD + H2] + gh[:, GPAD:GPAD + H2])
        nn_ = jnp.tanh(gx[:, 2 * GPAD:2 * GPAD + H2]
                       + r * (gh[:, 2 * GPAD:2 * GPAD + H2] + bhh_n))
        h = (1.0 - z) * nn_ + z * h

    # -- Linear(2H, 2) + log_softmax.
    #    fc weight is stored pre-permuted to the kernel's [h_fwd | h_bwd] lane
    #    order, so torch's cat([h_n[-1], h_n[-2]]) needs no lane shuffle here.
    fcw = misc[3:5, 0:H2]                                         # (2, 2H)
    l0 = jnp.sum(h * fcw[0:1, :], axis=1, keepdims=True)          # (B, 1)
    l1 = jnp.sum(h * fcw[1:2, :], axis=1, keepdims=True)
    logits = jnp.concatenate([l0, l1], axis=1) + misc[2:3, 0:2]   # (B, 2)
    m = jnp.max(logits, axis=-1, keepdims=True)
    lse = jnp.log(jnp.sum(jnp.exp(logits - m), axis=-1, keepdims=True)) + m
    o_ref[...] = logits - lse


def gru_model_forward(tokens, kp):
    # Row-major reshape only (no transpose): rows are batch-major b*T+t,
    # matching the kernel's internal layout.  Free under XLA.
    tok = tokens.reshape(BATCH * MAXLEN, 1)
    vmem = lambda: pl.BlockSpec(memory_space=pltpu.MemorySpace.VMEM)
    return pl.pallas_call(
        fused_forward_kernel,
        out_shape=jax.ShapeDtypeStruct((BATCH, 2), jnp.float32),
        in_specs=[vmem() for _ in range(6)],
        out_specs=vmem(),
    )(tok, kp["emb"], kp["ln_wb"], kp["wih"], kp["whh"], kp["misc"])


# ---- one-time packing of torch-layout params into the kernel layout ----------
def prepare_kernel_params(p):
    TB = BATCH * MAXLEN
    ln_wb = jnp.concatenate([p["ln_w"].reshape(TB, EMBED_DIM),
                             p["ln_b"].reshape(TB, EMBED_DIM)], axis=0)

    wih = jnp.zeros((EMBED_DIM, NG3), jnp.float32)
    whh = jnp.zeros((2 * HIDDEN, NG3), jnp.float32)
    gbias = jnp.zeros((NG3,), jnp.float32)
    for g in range(3):                         # torch gate order: r, z, n
        rows = slice(g * HIDDEN, (g + 1) * HIDDEN)
        cf = g * GPAD                          # forward lanes of this gate block
        cb = cf + HIDDEN                       # backward lanes
        wih = wih.at[:, cf:cf + HIDDEN].set(p["w_ih_f"][rows].T)
        wih = wih.at[:, cb:cb + HIDDEN].set(p["w_ih_b"][rows].T)
        # block-diagonal Whh: h_fwd rows feed fwd lanes, h_bwd rows feed bwd lanes
        whh = whh.at[0:HIDDEN, cf:cf + HIDDEN].set(p["w_hh_f"][rows].T)
        whh = whh.at[HIDDEN:2 * HIDDEN, cb:cb + HIDDEN].set(p["w_hh_b"][rows].T)
        bf = p["b_ih_f"][rows]
        bb = p["b_ih_b"][rows]
        if g < 2:                              # fold b_hh for r,z; b_hn stays in-loop
            bf = bf + p["b_hh_f"][rows]
            bb = bb + p["b_hh_b"][rows]
        gbias = gbias.at[cf:cf + HIDDEN].set(bf)
        gbias = gbias.at[cb:cb + HIDDEN].set(bb)

    bhh_n = jnp.concatenate([p["b_hh_f"][2 * HIDDEN:], p["b_hh_b"][2 * HIDDEN:]])
    # torch feat = [h_bwd | h_fwd]; kernel h = [h_fwd | h_bwd] -> permute fc cols
    fc_w_k = jnp.concatenate([p["fc_w"][:, HIDDEN:], p["fc_w"][:, :HIDDEN]], axis=1)
    fmask = (jnp.arange(NG3) % GPAD < HIDDEN).astype(jnp.float32)  # 1 on fwd lanes

    misc = jnp.zeros((MISC_ROWS, NG3), jnp.float32)
    misc = misc.at[0, :].set(gbias)
    misc = misc.at[1, 0:2 * HIDDEN].set(bhh_n)
    misc = misc.at[2, 0:2].set(p["fc_b"])
    misc = misc.at[3:5, 0:2 * HIDDEN].set(fc_w_k)
    misc = misc.at[5:5 + BATCH, :].set(jnp.broadcast_to(fmask, (BATCH, NG3)))

    return {"emb": p["embedding"], "ln_wb": ln_wb, "wih": wih,
            "whh": whh.astype(jnp.bfloat16), "misc": misc}


# ---- pure-JAX reference (sanity check, torch parameter layout) ----------------
def reference_forward(tokens, p):
    x = jnp.take(p["embedding"], tokens, axis=0)                  # (B, T, D)
    mean = jnp.mean(x)
    var = jnp.mean((x - mean) ** 2)
    x = (x - mean) * lax.rsqrt(var + EPS) * p["ln_w"] + p["ln_b"]

    def run_dir(xs, wih, whh, bih, bhh):
        def step(h, x_t):
            gx = x_t @ wih.T + bih
            gh = h @ whh.T + bhh
            r = jax.nn.sigmoid(gx[:, :HIDDEN] + gh[:, :HIDDEN])
            z = jax.nn.sigmoid(gx[:, HIDDEN:2 * HIDDEN] + gh[:, HIDDEN:2 * HIDDEN])
            n = jnp.tanh(gx[:, 2 * HIDDEN:] + r * gh[:, 2 * HIDDEN:])
            return (1.0 - z) * n + z * h, None
        h0 = jnp.zeros((BATCH, HIDDEN), jnp.float32)
        h_last, _ = lax.scan(step, h0, xs)
        return h_last

    x_tbd = jnp.transpose(x, (1, 0, 2))                           # (T, B, D)
    h_f = run_dir(x_tbd, p["w_ih_f"], p["w_hh_f"], p["b_ih_f"], p["b_hh_f"])
    h_b = run_dir(x_tbd[::-1], p["w_ih_b"], p["w_hh_b"], p["b_ih_b"], p["b_hh_b"])
    feat = jnp.concatenate([h_b, h_f], axis=1)                    # [h_n[-1], h_n[-2]]
    logits = feat @ p["fc_w"].T + p["fc_b"]
    return jax.nn.log_softmax(logits, axis=-1)


# ---- deterministic parameter construction (torch-like shapes) -----------------
def make_params(key):
    keys = jax.random.split(key, 16)
    k = 1.0 / jnp.sqrt(HIDDEN)
    kf = 1.0 / jnp.sqrt(2 * HIDDEN)

    def u(kk, shape, s):
        return jax.random.uniform(kk, shape, jnp.float32, -s, s)

    return {
        "embedding": jax.random.normal(keys[0], (VOCAB, EMBED_DIM), jnp.float32),
        "ln_w": 1.0 + 0.1 * jax.random.normal(keys[1], (BATCH, MAXLEN, EMBED_DIM),
                                              jnp.float32),
        "ln_b": 0.1 * jax.random.normal(keys[2], (BATCH, MAXLEN, EMBED_DIM),
                                        jnp.float32),
        # torch nn.GRU layout: weight_ih (3H, D), weight_hh (3H, H), biases (3H,),
        # gate rows ordered [r | z | n]; _f = forward dir, _b = reverse dir.
        "w_ih_f": u(keys[3], (H3, EMBED_DIM), k),
        "w_hh_f": u(keys[4], (H3, HIDDEN), k),
        "b_ih_f": u(keys[5], (H3,), k),
        "b_hh_f": u(keys[6], (H3,), k),
        "w_ih_b": u(keys[7], (H3, EMBED_DIM), k),
        "w_hh_b": u(keys[8], (H3, HIDDEN), k),
        "b_ih_b": u(keys[9], (H3,), k),
        "b_hh_b": u(keys[10], (H3,), k),
        # torch nn.Linear(2H, 2): weight (2, 2H), bias (2,)
        "fc_w": u(keys[11], (2, 2 * HIDDEN), kf),
        "fc_b": u(keys[12], (2,), kf),
    }


if __name__ == "__main__":
    key = jax.random.PRNGKey(0)
    pkey, tkey = jax.random.split(key)
    params = make_params(pkey)
    kparams = prepare_kernel_params(params)       # one-time packing
    tokens = jax.random.randint(tkey, (BATCH, MAXLEN), 0, VOCAB, jnp.int32)

    out = jax.jit(gru_model_forward)(tokens, kparams)
    out = jax.block_until_ready(out)

    ref = reference_forward(tokens, params)
    assert out.shape == (BATCH, 2)
    # Tolerance loosened slightly vs. pure f32: the recurrence matmul uses bf16
    # MXU operands (f32 accumulation); observed deviation is O(1e-3).
    assert jnp.allclose(out, ref, atol=2e-2, rtol=2e-2), (out, ref)

    print("KERNEL_OK")
</pallas_src>

<mosaic_0001>
module attributes {stable_mosaic.version = 11 : i64} {
  func.func @fused_forward_kernel(%arg0: memref<16x1xi32, #tpu.memory_space<vmem>>, %arg1: memref<50x100xf32, #tpu.memory_space<vmem>>, %arg2: memref<32x100xf32, #tpu.memory_space<vmem>>, %arg3: memref<100x384xf32, #tpu.memory_space<vmem>>, %arg4: memref<64x384xbf16, #tpu.memory_space<vmem>>, %arg5: memref<8x384xf32, #tpu.memory_space<vmem>>, %arg6: memref<2x2xf32, #tpu.memory_space<vmem>>) attributes {dimension_semantics = [], scalar_prefetch = 0 : i64, scratch_operands = 0 : i64, tpu.core_type = #tpu.core_type<tc>} {
    %c0 = arith.constant 0 : index
    %c0_0 = arith.constant 0 : index
    %0 = vector.load %arg0[%c0, %c0_0] : memref<16x1xi32, #tpu.memory_space<vmem>>, vector<16x1xi32>
    %1 = tpu.iota {dimensions = array<i32: 1>} : vector<16x50xi32>
    %2 = vector.broadcast %0 : vector<16x1xi32> to vector<16x50xi32>
    %3 = arith.cmpi eq, %2, %1 : vector<16x50xi32>
    %4 = arith.extui %3 : vector<16x50xi1> to vector<16x50xi32>
    %5 = arith.sitofp %4 : vector<16x50xi32> to vector<16x50xf32>
    %c0_1 = arith.constant 0 : index
    %c0_2 = arith.constant 0 : index
    %6 = vector.load %arg1[%c0_1, %c0_2] : memref<50x100xf32, #tpu.memory_space<vmem>>, vector<50x100xf32>
    %cst = arith.constant dense<0.000000e+00> : vector<16x100xf32>
    %7 = tpu.matmul %5, %6, %cst {dimension_numbers = #tpu.dot_dimension_numbers<[1], [0], [0], [1], [0, 0, 1, 1], [], []>} : vector<16x50xf32>, vector<50x100xf32>, vector<16x100xf32> -> vector<16x100xf32>
    %8 = vector.shape_cast %7 : vector<16x100xf32> to vector<1x16x100xf32>
    %cst_3 = arith.constant dense<0.000000e+00> : vector<1xf32>
    %9 = vector.multi_reduction <add>, %8, %cst_3 [1, 2] : vector<1x16x100xf32> to vector<1xf32>
    %10 = vector.shape_cast %9 : vector<1xf32> to vector<1x1x1xf32>
    %11 = vector.extract %10[0, 0, 0] : f32 from vector<1x1x1xf32>
    %12 = arith.mulf %7, %7 : vector<16x100xf32>
    %13 = vector.shape_cast %12 : vector<16x100xf32> to vector<1x16x100xf32>
    %cst_4 = arith.constant dense<0.000000e+00> : vector<1xf32>
    %14 = vector.multi_reduction <add>, %13, %cst_4 [1, 2] : vector<1x16x100xf32> to vector<1xf32>
    %15 = vector.shape_cast %14 : vector<1xf32> to vector<1x1x1xf32>
    %16 = vector.extract %15[0, 0, 0] : f32 from vector<1x1x1xf32>
    %cst_5 = arith.constant 1.600000e+03 : f32
    %17 = arith.divf %11, %cst_5 : f32
    %cst_6 = arith.constant 1.600000e+03 : f32
    %18 = arith.divf %16, %cst_6 : f32
    %19 = arith.mulf %17, %17 : f32
    %20 = arith.subf %18, %19 : f32
    %c0_7 = arith.constant 0 : index
    %c0_8 = arith.constant 0 : index
    %21 = vector.load %arg2[%c0_7, %c0_8] : memref<32x100xf32, #tpu.memory_space<vmem>>, vector<32x100xf32>
    %22 = vector.broadcast %17 : f32 to vector<16x100xf32>
    %23 = arith.subf %7, %22 : vector<16x100xf32>
    %cst_9 = arith.constant 9.99999974E-6 : f32
    %24 = arith.addf %20, %cst_9 : f32
    %25 = math.rsqrt %24 : f32
    %26 = vector.broadcast %25 : f32 to vector<16x100xf32>
    %27 = arith.mulf %23, %26 : vector<16x100xf32>
    %28 = vector.extract_strided_slice %21 {offsets = [0, 0], sizes = [16, 100], strides = [1, 1]} : vector<32x100xf32> to vector<16x100xf32>
    %29 = arith.mulf %27, %28 : vector<16x100xf32>
    %30 = vector.extract_strided_slice %21 {offsets = [16, 0], sizes = [16, 100], strides = [1, 1]} : vector<32x100xf32> to vector<16x100xf32>
    %31 = arith.addf %29, %30 : vector<16x100xf32>
    %c0_10 = arith.constant 0 : index
    %c0_11 = arith.constant 0 : index
    %32 = vector.load %arg5[%c0_10, %c0_11] : memref<8x384xf32, #tpu.memory_space<vmem>>, vector<8x384xf32>
    %c0_12 = arith.constant 0 : index
    %c0_13 = arith.constant 0 : index
    %33 = vector.load %arg3[%c0_12, %c0_13] : memref<100x384xf32, #tpu.memory_space<vmem>>, vector<100x384xf32>
    %cst_14 = arith.constant dense<0.000000e+00> : vector<16x384xf32>
    %34 = tpu.matmul %31, %33, %cst_14 {dimension_numbers = #tpu.dot_dimension_numbers<[1], [0], [0], [1], [0, 0, 1, 1], [], []>} : vector<16x100xf32>, vector<100x384xf32>, vector<16x384xf32> -> vector<16x384xf32>
    %35 = vector.extract_strided_slice %32 {offsets = [0, 0], sizes = [1, 384], strides = [1, 1]} : vector<8x384xf32> to vector<1x384xf32>
    %36 = vector.broadcast %35 : vector<1x384xf32> to vector<16x384xf32>
    %37 = arith.addf %34, %36 : vector<16x384xf32>
    %38 = vector.extract_strided_slice %32 {offsets = [5, 0], sizes = [2, 384], strides = [1, 1]} : vector<8x384xf32> to vector<2x384xf32>
    %cst_15 = arith.constant 5.000000e-01 : f32
    %39 = vector.broadcast %cst_15 : f32 to vector<2x384xf32>
    %40 = arith.cmpf ogt, %38, %39 : vector<2x384xf32>
    %41 = vector.extract_strided_slice %37 {offsets = [0, 0], sizes = [1, 384], strides = [1, 1]} : vector<16x384xf32> to vector<1x384xf32>
    %42 = vector.extract_strided_slice %37 {offsets = [8, 0], sizes = [1, 384], strides = [1, 1]} : vector<16x384xf32> to vector<1x384xf32>
    %43 = tpu.concatenate %41, %42 in 0 : vector<1x384xf32>, vector<1x384xf32> -> vector<2x384xf32>
    %44 = vector.extract_strided_slice %37 {offsets = [1, 0], sizes = [1, 384], strides = [1, 1]} : vector<16x384xf32> to vector<1x384xf32>
    %45 = vector.extract_strided_slice %37 {offsets = [9, 0], sizes = [1, 384], strides = [1, 1]} : vector<16x384xf32> to vector<1x384xf32>
    %46 = tpu.concatenate %44, %45 in 0 : vector<1x384xf32>, vector<1x384xf32> -> vector<2x384xf32>
    %47 = vector.extract_strided_slice %37 {offsets = [2, 0], sizes = [1, 384], strides = [1, 1]} : vector<16x384xf32> to vector<1x384xf32>
    %48 = vector.extract_strided_slice %37 {offsets = [10, 0], sizes = [1, 384], strides = [1, 1]} : vector<16x384xf32> to vector<1x384xf32>
    %49 = tpu.concatenate %47, %48 in 0 : vector<1x384xf32>, vector<1x384xf32> -> vector<2x384xf32>
    %50 = vector.extract_strided_slice %37 {offsets = [3, 0], sizes = [1, 384], strides = [1, 1]} : vector<16x384xf32> to vector<1x384xf32>
    %51 = vector.extract_strided_slice %37 {offsets = [11, 0], sizes = [1, 384], strides = [1, 1]} : vector<16x384xf32> to vector<1x384xf32>
    %52 = tpu.concatenate %50, %51 in 0 : vector<1x384xf32>, vector<1x384xf32> -> vector<2x384xf32>
    %53 = vector.extract_strided_slice %37 {offsets = [4, 0], sizes = [1, 384], strides = [1, 1]} : vector<16x384xf32> to vector<1x384xf32>
    %54 = vector.extract_strided_slice %37 {offsets = [12, 0], sizes = [1, 384], strides = [1, 1]} : vector<16x384xf32> to vector<1x384xf32>
    %55 = tpu.concatenate %53, %54 in 0 : vector<1x384xf32>, vector<1x384xf32> -> vector<2x384xf32>
    %56 = vector.extract_strided_slice %37 {offsets = [5, 0], sizes = [1, 384], strides = [1, 1]} : vector<16x384xf32> to vector<1x384xf32>
    %57 = vector.extract_strided_slice %37 {offsets = [13, 0], sizes = [1, 384], strides = [1, 1]} : vector<16x384xf32> to vector<1x384xf32>
    %58 = tpu.concatenate %56, %57 in 0 : vector<1x384xf32>, vector<1x384xf32> -> vector<2x384xf32>
    %59 = vector.extract_strided_slice %37 {offsets = [6, 0], sizes = [1, 384], strides = [1, 1]} : vector<16x384xf32> to vector<1x384xf32>
    %60 = vector.extract_strided_slice %37 {offsets = [14, 0], sizes = [1, 384], strides = [1, 1]} : vector<16x384xf32> to vector<1x384xf32>
    %61 = tpu.concatenate %59, %60 in 0 : vector<1x384xf32>, vector<1x384xf32> -> vector<2x384xf32>
    %62 = vector.extract_strided_slice %37 {offsets = [7, 0], sizes = [1, 384], strides = [1, 1]} : vector<16x384xf32> to vector<1x384xf32>
    %63 = vector.extract_strided_slice %37 {offsets = [15, 0], sizes = [1, 384], strides = [1, 1]} : vector<16x384xf32> to vector<1x384xf32>
    %64 = tpu.concatenate %62, %63 in 0 : vector<1x384xf32>, vector<1x384xf32> -> vector<2x384xf32>
    %65 = arith.select %40, %43, %64 : vector<2x384xi1>, vector<2x384xf32>
    %66 = arith.select %40, %46, %61 : vector<2x384xi1>, vector<2x384xf32>
    %67 = arith.select %40, %49, %58 : vector<2x384xi1>, vector<2x384xf32>
    %68 = arith.select %40, %52, %55 : vector<2x384xi1>, vector<2x384xf32>
    %69 = arith.select %40, %55, %52 : vector<2x384xi1>, vector<2x384xf32>
    %70 = arith.select %40, %58, %49 : vector<2x384xi1>, vector<2x384xf32>
    %71 = arith.select %40, %61, %46 : vector<2x384xi1>, vector<2x384xf32>
    %72 = arith.select %40, %64, %43 : vector<2x384xi1>, vector<2x384xf32>
    %c0_16 = arith.constant 0 : index
    %c0_17 = arith.constant 0 : index
    %73 = vector.load %arg4[%c0_16, %c0_17] : memref<64x384xbf16, #tpu.memory_space<vmem>>, vector<64x384xbf16>
    %74 = vector.extract_strided_slice %32 {offsets = [1, 0], sizes = [1, 64], strides = [1, 1]} : vector<8x384xf32> to vector<1x64xf32>
    %cst_18 = arith.constant 0.000000e+00 : f32
    %75 = vector.broadcast %cst_18 : f32 to vector<2x64xf32>
    %76 = arith.truncf %75 : vector<2x64xf32> to vector<2x64xbf16>
    %cst_19 = arith.constant dense<0.000000e+00> : vector<2x384xf32>
    %77 = tpu.matmul %76, %73, %cst_19 {dimension_numbers = #tpu.dot_dimension_numbers<[1], [0], [0], [1], [0, 0, 1, 1], [], []>} : vector<2x64xbf16>, vector<64x384xbf16>, vector<2x384xf32> -> vector<2x384xf32>
    %78 = vector.extract_strided_slice %65 {offsets = [0, 0], sizes = [2, 64], strides = [1, 1]} : vector<2x384xf32> to vector<2x64xf32>
    %79 = vector.extract_strided_slice %77 {offsets = [0, 0], sizes = [2, 64], strides = [1, 1]} : vector<2x384xf32> to vector<2x64xf32>
    %80 = arith.addf %78, %79 : vector<2x64xf32>
    %81 = arith.negf %80 : vector<2x64xf32>
    %82 = math.exp %81 : vector<2x64xf32>
    %cst_20 = arith.constant 1.000000e+00 : f32
    %83 = vector.broadcast %cst_20 : f32 to vector<2x64xf32>
    %84 = arith.addf %83, %82 : vector<2x64xf32>
    %85 = arith.divf %83, %84 : vector<2x64xf32>
    %86 = vector.extract_strided_slice %65 {offsets = [0, 128], sizes = [2, 64], strides = [1, 1]} : vector<2x384xf32> to vector<2x64xf32>
    %87 = vector.extract_strided_slice %77 {offsets = [0, 128], sizes = [2, 64], strides = [1, 1]} : vector<2x384xf32> to vector<2x64xf32>
    %88 = arith.addf %86, %87 : vector<2x64xf32>
    %89 = arith.negf %88 : vector<2x64xf32>
    %90 = math.exp %89 : vector<2x64xf32>
    %cst_21 = arith.constant 1.000000e+00 : f32
    %91 = vector.broadcast %cst_21 : f32 to vector<2x64xf32>
    %92 = arith.addf %91, %90 : vector<2x64xf32>
    %93 = arith.divf %91, %92 : vector<2x64xf32>
    %94 = vector.extract_strided_slice %65 {offsets = [0, 256], sizes = [2, 64], strides = [1, 1]} : vector<2x384xf32> to vector<2x64xf32>
    %95 = vector.extract_strided_slice %77 {offsets = [0, 256], sizes = [2, 64], strides = [1, 1]} : vector<2x384xf32> to vector<2x64xf32>
    %96 = vector.broadcast %74 : vector<1x64xf32> to vector<2x64xf32>
    %97 = arith.addf %95, %96 : vector<2x64xf32>
    %98 = arith.mulf %85, %97 : vector<2x64xf32>
    %99 = arith.addf %94, %98 : vector<2x64xf32>
    %100 = math.tanh %99 : vector<2x64xf32>
    %cst_22 = arith.constant 1.000000e+00 : f32
    %101 = vector.broadcast %cst_22 : f32 to vector<2x64xf32>
    %102 = arith.subf %101, %93 : vector<2x64xf32>
    %103 = arith.mulf %102, %100 : vector<2x64xf32>
    %104 = arith.mulf %93, %75 : vector<2x64xf32>
    %105 = arith.addf %103, %104 : vector<2x64xf32>
    %106 = arith.truncf %105 : vector<2x64xf32> to vector<2x64xbf16>
    %cst_23 = arith.constant dense<0.000000e+00> : vector<2x384xf32>
    %107 = tpu.matmul %106, %73, %cst_23 {dimension_numbers = #tpu.dot_dimension_numbers<[1], [0], [0], [1], [0, 0, 1, 1], [], []>} : vector<2x64xbf16>, vector<64x384xbf16>, vector<2x384xf32> -> vector<2x384xf32>
    %108 = vector.extract_strided_slice %66 {offsets = [0, 0], sizes = [2, 64], strides = [1, 1]} : vector<2x384xf32> to vector<2x64xf32>
    %109 = vector.extract_strided_slice %107 {offsets = [0, 0], sizes = [2, 64], strides = [1, 1]} : vector<2x384xf32> to vector<2x64xf32>
    %110 = arith.addf %108, %109 : vector<2x64xf32>
    %111 = arith.negf %110 : vector<2x64xf32>
    %112 = math.exp %111 : vector<2x64xf32>
    %cst_24 = arith.constant 1.000000e+00 : f32
    %113 = vector.broadcast %cst_24 : f32 to vector<2x64xf32>
    %114 = arith.addf %113, %112 : vector<2x64xf32>
    %115 = arith.divf %113, %114 : vector<2x64xf32>
    %116 = vector.extract_strided_slice %66 {offsets = [0, 128], sizes = [2, 64], strides = [1, 1]} : vector<2x384xf32> to vector<2x64xf32>
    %117 = vector.extract_strided_slice %107 {offsets = [0, 128], sizes = [2, 64], strides = [1, 1]} : vector<2x384xf32> to vector<2x64xf32>
    %118 = arith.addf %116, %117 : vector<2x64xf32>
    %119 = arith.negf %118 : vector<2x64xf32>
    %120 = math.exp %119 : vector<2x64xf32>
    %cst_25 = arith.constant 1.000000e+00 : f32
    %121 = vector.broadcast %cst_25 : f32 to vector<2x64xf32>
    %122 = arith.addf %121, %120 : vector<2x64xf32>
    %123 = arith.divf %121, %122 : vector<2x64xf32>
    %124 = vector.extract_strided_slice %66 {offsets = [0, 256], sizes = [2, 64], strides = [1, 1]} : vector<2x384xf32> to vector<2x64xf32>
    %125 = vector.extract_strided_slice %107 {offsets = [0, 256], sizes = [2, 64], strides = [1, 1]} : vector<2x384xf32> to vector<2x64xf32>
    %126 = vector.broadcast %74 : vector<1x64xf32> to vector<2x64xf32>
    %127 = arith.addf %125, %126 : vector<2x64xf32>
    %128 = arith.mulf %115, %127 : vector<2x64xf32>
    %129 = arith.addf %124, %128 : vector<2x64xf32>
    %130 = math.tanh %129 : vector<2x64xf32>
    %cst_26 = arith.constant 1.000000e+00 : f32
    %131 = vector.broadcast %cst_26 : f32 to vector<2x64xf32>
    %132 = arith.subf %131, %123 : vector<2x64xf32>
    %133 = arith.mulf %132, %130 : vector<2x64xf32>
    %134 = arith.mulf %123, %105 : vector<2x64xf32>
    %135 = arith.addf %133, %134 : vector<2x64xf32>
    %136 = arith.truncf %135 : vector<2x64xf32> to vector<2x64xbf16>
    %cst_27 = arith.constant dense<0.000000e+00> : vector<2x384xf32>
    %137 = tpu.matmul %136, %73, %cst_27 {dimension_numbers = #tpu.dot_dimension_numbers<[1], [0], [0], [1], [0, 0, 1, 1], [], []>} : vector<2x64xbf16>, vector<64x384xbf16>, vector<2x384xf32> -> vector<2x384xf32>
    %138 = vector.extract_strided_slice %67 {offsets = [0, 0], sizes = [2, 64], strides = [1, 1]} : vector<2x384xf32> to vector<2x64xf32>
    %139 = vector.extract_strided_slice %137 {offsets = [0, 0], sizes = [2, 64], strides = [1, 1]} : vector<2x384xf32> to vector<2x64xf32>
    %140 = arith.addf %138, %139 : vector<2x64xf32>
    %141 = arith.negf %140 : vector<2x64xf32>
    %142 = math.exp %141 : vector<2x64xf32>
    %cst_28 = arith.constant 1.000000e+00 : f32
    %143 = vector.broadcast %cst_28 : f32 to vector<2x64xf32>
    %144 = arith.addf %143, %142 : vector<2x64xf32>
    %145 = arith.divf %143, %144 : vector<2x64xf32>
    %146 = vector.extract_strided_slice %67 {offsets = [0, 128], sizes = [2, 64], strides = [1, 1]} : vector<2x384xf32> to vector<2x64xf32>
    %147 = vector.extract_strided_slice %137 {offsets = [0, 128], sizes = [2, 64], strides = [1, 1]} : vector<2x384xf32> to vector<2x64xf32>
    %148 = arith.addf %146, %147 : vector<2x64xf32>
    %149 = arith.negf %148 : vector<2x64xf32>
    %150 = math.exp %149 : vector<2x64xf32>
    %cst_29 = arith.constant 1.000000e+00 : f32
    %151 = vector.broadcast %cst_29 : f32 to vector<2x64xf32>
    %152 = arith.addf %151, %150 : vector<2x64xf32>
    %153 = arith.divf %151, %152 : vector<2x64xf32>
    %154 = vector.extract_strided_slice %67 {offsets = [0, 256], sizes = [2, 64], strides = [1, 1]} : vector<2x384xf32> to vector<2x64xf32>
    %155 = vector.extract_strided_slice %137 {offsets = [0, 256], sizes = [2, 64], strides = [1, 1]} : vector<2x384xf32> to vector<2x64xf32>
    %156 = vector.broadcast %74 : vector<1x64xf32> to vector<2x64xf32>
    %157 = arith.addf %155, %156 : vector<2x64xf32>
    %158 = arith.mulf %145, %157 : vector<2x64xf32>
    %159 = arith.addf %154, %158 : vector<2x64xf32>
    %160 = math.tanh %159 : vector<2x64xf32>
    %cst_30 = arith.constant 1.000000e+00 : f32
    %161 = vector.broadcast %cst_30 : f32 to vector<2x64xf32>
    %162 = arith.subf %161, %153 : vector<2x64xf32>
    %163 = arith.mulf %162, %160 : vector<2x64xf32>
    %164 = arith.mulf %153, %135 : vector<2x64xf32>
    %165 = arith.addf %163, %164 : vector<2x64xf32>
    %166 = arith.truncf %165 : vector<2x64xf32> to vector<2x64xbf16>
    %cst_31 = arith.constant dense<0.000000e+00> : vector<2x384xf32>
    %167 = tpu.matmul %166, %73, %cst_31 {dimension_numbers = #tpu.dot_dimension_numbers<[1], [0], [0], [1], [0, 0, 1, 1], [], []>} : vector<2x64xbf16>, vector<64x384xbf16>, vector<2x384xf32> -> vector<2x384xf32>
    %168 = vector.extract_strided_slice %68 {offsets = [0, 0], sizes = [2, 64], strides = [1, 1]} : vector<2x384xf32> to vector<2x64xf32>
    %169 = vector.extract_strided_slice %167 {offsets = [0, 0], sizes = [2, 64], strides = [1, 1]} : vector<2x384xf32> to vector<2x64xf32>
    %170 = arith.addf %168, %169 : vector<2x64xf32>
    %171 = arith.negf %170 : vector<2x64xf32>
    %172 = math.exp %171 : vector<2x64xf32>
    %cst_32 = arith.constant 1.000000e+00 : f32
    %173 = vector.broadcast %cst_32 : f32 to vector<2x64xf32>
    %174 = arith.addf %173, %172 : vector<2x64xf32>
    %175 = arith.divf %173, %174 : vector<2x64xf32>
    %176 = vector.extract_strided_slice %68 {offsets = [0, 128], sizes = [2, 64], strides = [1, 1]} : vector<2x384xf32> to vector<2x64xf32>
    %177 = vector.extract_strided_slice %167 {offsets = [0, 128], sizes = [2, 64], strides = [1, 1]} : vector<2x384xf32> to vector<2x64xf32>
    %178 = arith.addf %176, %177 : vector<2x64xf32>
    %179 = arith.negf %178 : vector<2x64xf32>
    %180 = math.exp %179 : vector<2x64xf32>
    %cst_33 = arith.constant 1.000000e+00 : f32
    %181 = vector.broadcast %cst_33 : f32 to vector<2x64xf32>
    %182 = arith.addf %181, %180 : vector<2x64xf32>
    %183 = arith.divf %181, %182 : vector<2x64xf32>
    %184 = vector.extract_strided_slice %68 {offsets = [0, 256], sizes = [2, 64], strides = [1, 1]} : vector<2x384xf32> to vector<2x64xf32>
    %185 = vector.extract_strided_slice %167 {offsets = [0, 256], sizes = [2, 64], strides = [1, 1]} : vector<2x384xf32> to vector<2x64xf32>
    %186 = vector.broadcast %74 : vector<1x64xf32> to vector<2x64xf32>
    %187 = arith.addf %185, %186 : vector<2x64xf32>
    %188 = arith.mulf %175, %187 : vector<2x64xf32>
    %189 = arith.addf %184, %188 : vector<2x64xf32>
    %190 = math.tanh %189 : vector<2x64xf32>
    %cst_34 = arith.constant 1.000000e+00 : f32
    %191 = vector.broadcast %cst_34 : f32 to vector<2x64xf32>
    %192 = arith.subf %191, %183 : vector<2x64xf32>
    %193 = arith.mulf %192, %190 : vector<2x64xf32>
    %194 = arith.mulf %183, %165 : vector<2x64xf32>
    %195 = arith.addf %193, %194 : vector<2x64xf32>
    %196 = arith.truncf %195 : vector<2x64xf32> to vector<2x64xbf16>
    %cst_35 = arith.constant dense<0.000000e+00> : vector<2x384xf32>
    %197 = tpu.matmul %196, %73, %cst_35 {dimension_numbers = #tpu.dot_dimension_numbers<[1], [0], [0], [1], [0, 0, 1, 1], [], []>} : vector<2x64xbf16>, vector<64x384xbf16>, vector<2x384xf32> -> vector<2x384xf32>
    %198 = vector.extract_strided_slice %69 {offsets = [0, 0], sizes = [2, 64], strides = [1, 1]} : vector<2x384xf32> to vector<2x64xf32>
    %199 = vector.extract_strided_slice %197 {offsets = [0, 0], sizes = [2, 64], strides = [1, 1]} : vector<2x384xf32> to vector<2x64xf32>
    %200 = arith.addf %198, %199 : vector<2x64xf32>
    %201 = arith.negf %200 : vector<2x64xf32>
    %202 = math.exp %201 : vector<2x64xf32>
    %cst_36 = arith.constant 1.000000e+00 : f32
    %203 = vector.broadcast %cst_36 : f32 to vector<2x64xf32>
    %204 = arith.addf %203, %202 : vector<2x64xf32>
    %205 = arith.divf %203, %204 : vector<2x64xf32>
    %206 = vector.extract_strided_slice %69 {offsets = [0, 128], sizes = [2, 64], strides = [1, 1]} : vector<2x384xf32> to vector<2x64xf32>
    %207 = vector.extract_strided_slice %197 {offsets = [0, 128], sizes = [2, 64], strides = [1, 1]} : vector<2x384xf32> to vector<2x64xf32>
    %208 = arith.addf %206, %207 : vector<2x64xf32>
    %209 = arith.negf %208 : vector<2x64xf32>
    %210 = math.exp %209 : vector<2x64xf32>
    %cst_37 = arith.constant 1.000000e+00 : f32
    %211 = vector.broadcast %cst_37 : f32 to vector<2x64xf32>
    %212 = arith.addf %211, %210 : vector<2x64xf32>
    %213 = arith.divf %211, %212 : vector<2x64xf32>
    %214 = vector.extract_strided_slice %69 {offsets = [0, 256], sizes = [2, 64], strides = [1, 1]} : vector<2x384xf32> to vector<2x64xf32>
    %215 = vector.extract_strided_slice %197 {offsets = [0, 256], sizes = [2, 64], strides = [1, 1]} : vector<2x384xf32> to vector<2x64xf32>
    %216 = vector.broadcast %74 : vector<1x64xf32> to vector<2x64xf32>
    %217 = arith.addf %215, %216 : vector<2x64xf32>
    %218 = arith.mulf %205, %217 : vector<2x64xf32>
    %219 = arith.addf %214, %218 : vector<2x64xf32>
    %220 = math.tanh %219 : vector<2x64xf32>
    %cst_38 = arith.constant 1.000000e+00 : f32
    %221 = vector.broadcast %cst_38 : f32 to vector<2x64xf32>
    %222 = arith.subf %221, %213 : vector<2x64xf32>
    %223 = arith.mulf %222, %220 : vector<2x64xf32>
    %224 = arith.mulf %213, %195 : vector<2x64xf32>
    %225 = arith.addf %223, %224 : vector<2x64xf32>
    %226 = arith.truncf %225 : vector<2x64xf32> to vector<2x64xbf16>
    %cst_39 = arith.constant dense<0.000000e+00> : vector<2x384xf32>
    %227 = tpu.matmul %226, %73, %cst_39 {dimension_numbers = #tpu.dot_dimension_numbers<[1], [0], [0], [1], [0, 0, 1, 1], [], []>} : vector<2x64xbf16>, vector<64x384xbf16>, vector<2x384xf32> -> vector<2x384xf32>
    %228 = vector.extract_strided_slice %70 {offsets = [0, 0], sizes = [2, 64], strides = [1, 1]} : vector<2x384xf32> to vector<2x64xf32>
    %229 = vector.extract_strided_slice %227 {offsets = [0, 0], sizes = [2, 64], strides = [1, 1]} : vector<2x384xf32> to vector<2x64xf32>
    %230 = arith.addf %228, %229 : vector<2x64xf32>
    %231 = arith.negf %230 : vector<2x64xf32>
    %232 = math.exp %231 : vector<2x64xf32>
    %cst_40 = arith.constant 1.000000e+00 : f32
    %233 = vector.broadcast %cst_40 : f32 to vector<2x64xf32>
    %234 = arith.addf %233, %232 : vector<2x64xf32>
    %235 = arith.divf %233, %234 : vector<2x64xf32>
    %236 = vector.extract_strided_slice %70 {offsets = [0, 128], sizes = [2, 64], strides = [1, 1]} : vector<2x384xf32> to vector<2x64xf32>
    %237 = vector.extract_strided_slice %227 {offsets = [0, 128], sizes = [2, 64], strides = [1, 1]} : vector<2x384xf32> to vector<2x64xf32>
    %238 = arith.addf %236, %237 : vector<2x64xf32>
    %239 = arith.negf %238 : vector<2x64xf32>
    %240 = math.exp %239 : vector<2x64xf32>
    %cst_41 = arith.constant 1.000000e+00 : f32
    %241 = vector.broadcast %cst_41 : f32 to vector<2x64xf32>
    %242 = arith.addf %241, %240 : vector<2x64xf32>
    %243 = arith.divf %241, %242 : vector<2x64xf32>
    %244 = vector.extract_strided_slice %70 {offsets = [0, 256], sizes = [2, 64], strides = [1, 1]} : vector<2x384xf32> to vector<2x64xf32>
    %245 = vector.extract_strided_slice %227 {offsets = [0, 256], sizes = [2, 64], strides = [1, 1]} : vector<2x384xf32> to vector<2x64xf32>
    %246 = vector.broadcast %74 : vector<1x64xf32> to vector<2x64xf32>
    %247 = arith.addf %245, %246 : vector<2x64xf32>
    %248 = arith.mulf %235, %247 : vector<2x64xf32>
    %249 = arith.addf %244, %248 : vector<2x64xf32>
    %250 = math.tanh %249 : vector<2x64xf32>
    %cst_42 = arith.constant 1.000000e+00 : f32
    %251 = vector.broadcast %cst_42 : f32 to vector<2x64xf32>
    %252 = arith.subf %251, %243 : vector<2x64xf32>
    %253 = arith.mulf %252, %250 : vector<2x64xf32>
    %254 = arith.mulf %243, %225 : vector<2x64xf32>
    %255 = arith.addf %253, %254 : vector<2x64xf32>
    %256 = arith.truncf %255 : vector<2x64xf32> to vector<2x64xbf16>
    %cst_43 = arith.constant dense<0.000000e+00> : vector<2x384xf32>
    %257 = tpu.matmul %256, %73, %cst_43 {dimension_numbers = #tpu.dot_dimension_numbers<[1], [0], [0], [1], [0, 0, 1, 1], [], []>} : vector<2x64xbf16>, vector<64x384xbf16>, vector<2x384xf32> -> vector<2x384xf32>
    %258 = vector.extract_strided_slice %71 {offsets = [0, 0], sizes = [2, 64], strides = [1, 1]} : vector<2x384xf32> to vector<2x64xf32>
    %259 = vector.extract_strided_slice %257 {offsets = [0, 0], sizes = [2, 64], strides = [1, 1]} : vector<2x384xf32> to vector<2x64xf32>
    %260 = arith.addf %258, %259 : vector<2x64xf32>
    %261 = arith.negf %260 : vector<2x64xf32>
    %262 = math.exp %261 : vector<2x64xf32>
    %cst_44 = arith.constant 1.000000e+00 : f32
    %263 = vector.broadcast %cst_44 : f32 to vector<2x64xf32>
    %264 = arith.addf %263, %262 : vector<2x64xf32>
    %265 = arith.divf %263, %264 : vector<2x64xf32>
    %266 = vector.extract_strided_slice %71 {offsets = [0, 128], sizes = [2, 64], strides = [1, 1]} : vector<2x384xf32> to vector<2x64xf32>
    %267 = vector.extract_strided_slice %257 {offsets = [0, 128], sizes = [2, 64], strides = [1, 1]} : vector<2x384xf32> to vector<2x64xf32>
    %268 = arith.addf %266, %267 : vector<2x64xf32>
    %269 = arith.negf %268 : vector<2x64xf32>
    %270 = math.exp %269 : vector<2x64xf32>
    %cst_45 = arith.constant 1.000000e+00 : f32
    %271 = vector.broadcast %cst_45 : f32 to vector<2x64xf32>
    %272 = arith.addf %271, %270 : vector<2x64xf32>
    %273 = arith.divf %271, %272 : vector<2x64xf32>
    %274 = vector.extract_strided_slice %71 {offsets = [0, 256], sizes = [2, 64], strides = [1, 1]} : vector<2x384xf32> to vector<2x64xf32>
    %275 = vector.extract_strided_slice %257 {offsets = [0, 256], sizes = [2, 64], strides = [1, 1]} : vector<2x384xf32> to vector<2x64xf32>
    %276 = vector.broadcast %74 : vector<1x64xf32> to vector<2x64xf32>
    %277 = arith.addf %275, %276 : vector<2x64xf32>
    %278 = arith.mulf %265, %277 : vector<2x64xf32>
    %279 = arith.addf %274, %278 : vector<2x64xf32>
    %280 = math.tanh %279 : vector<2x64xf32>
    %cst_46 = arith.constant 1.000000e+00 : f32
    %281 = vector.broadcast %cst_46 : f32 to vector<2x64xf32>
    %282 = arith.subf %281, %273 : vector<2x64xf32>
    %283 = arith.mulf %282, %280 : vector<2x64xf32>
    %284 = arith.mulf %273, %255 : vector<2x64xf32>
    %285 = arith.addf %283, %284 : vector<2x64xf32>
    %286 = arith.truncf %285 : vector<2x64xf32> to vector<2x64xbf16>
    %cst_47 = arith.constant dense<0.000000e+00> : vector<2x384xf32>
    %287 = tpu.matmul %286, %73, %cst_47 {dimension_numbers = #tpu.dot_dimension_numbers<[1], [0], [0], [1], [0, 0, 1, 1], [], []>} : vector<2x64xbf16>, vector<64x384xbf16>, vector<2x384xf32> -> vector<2x384xf32>
    %288 = vector.extract_strided_slice %72 {offsets = [0, 0], sizes = [2, 64], strides = [1, 1]} : vector<2x384xf32> to vector<2x64xf32>
    %289 = vector.extract_strided_slice %287 {offsets = [0, 0], sizes = [2, 64], strides = [1, 1]} : vector<2x384xf32> to vector<2x64xf32>
    %290 = arith.addf %288, %289 : vector<2x64xf32>
    %291 = arith.negf %290 : vector<2x64xf32>
    %292 = math.exp %291 : vector<2x64xf32>
    %cst_48 = arith.constant 1.000000e+00 : f32
    %293 = vector.broadcast %cst_48 : f32 to vector<2x64xf32>
    %294 = arith.addf %293, %292 : vector<2x64xf32>
    %295 = arith.divf %293, %294 : vector<2x64xf32>
    %296 = vector.extract_strided_slice %72 {offsets = [0, 128], sizes = [2, 64], strides = [1, 1]} : vector<2x384xf32> to vector<2x64xf32>
    %297 = vector.extract_strided_slice %287 {offsets = [0, 128], sizes = [2, 64], strides = [1, 1]} : vector<2x384xf32> to vector<2x64xf32>
    %298 = arith.addf %296, %297 : vector<2x64xf32>
    %299 = arith.negf %298 : vector<2x64xf32>
    %300 = math.exp %299 : vector<2x64xf32>
    %cst_49 = arith.constant 1.000000e+00 : f32
    %301 = vector.broadcast %cst_49 : f32 to vector<2x64xf32>
    %302 = arith.addf %301, %300 : vector<2x64xf32>
    %303 = arith.divf %301, %302 : vector<2x64xf32>
    %304 = vector.extract_strided_slice %72 {offsets = [0, 256], sizes = [2, 64], strides = [1, 1]} : vector<2x384xf32> to vector<2x64xf32>
    %305 = vector.extract_strided_slice %287 {offsets = [0, 256], sizes = [2, 64], strides = [1, 1]} : vector<2x384xf32> to vector<2x64xf32>
    %306 = vector.broadcast %74 : vector<1x64xf32> to vector<2x64xf32>
    %307 = arith.addf %305, %306 : vector<2x64xf32>
    %308 = arith.mulf %295, %307 : vector<2x64xf32>
    %309 = arith.addf %304, %308 : vector<2x64xf32>
    %310 = math.tanh %309 : vector<2x64xf32>
    %cst_50 = arith.constant 1.000000e+00 : f32
    %311 = vector.broadcast %cst_50 : f32 to vector<2x64xf32>
    %312 = arith.subf %311, %303 : vector<2x64xf32>
    %313 = arith.mulf %312, %310 : vector<2x64xf32>
    %314 = arith.mulf %303, %285 : vector<2x64xf32>
    %315 = arith.addf %313, %314 : vector<2x64xf32>
    %316 = vector.extract_strided_slice %32 {offsets = [3, 0], sizes = [2, 64], strides = [1, 1]} : vector<8x384xf32> to vector<2x64xf32>
    %317 = vector.extract_strided_slice %316 {offsets = [0, 0], sizes = [1, 64], strides = [1, 1]} : vector<2x64xf32> to vector<1x64xf32>
    %318 = vector.broadcast %317 : vector<1x64xf32> to vector<2x64xf32>
    %319 = arith.mulf %315, %318 : vector<2x64xf32>
    %cst_51 = arith.constant dense<0.000000e+00> : vector<2xf32>
    %320 = vector.multi_reduction <add>, %319, %cst_51 [1] : vector<2x64xf32> to vector<2xf32>
    %321 = vector.shape_cast %320 : vector<2xf32> to vector<2x1xf32>
    %322 = vector.extract_strided_slice %316 {offsets = [1, 0], sizes = [1, 64], strides = [1, 1]} : vector<2x64xf32> to vector<1x64xf32>
    %323 = vector.broadcast %322 : vector<1x64xf32> to vector<2x64xf32>
    %324 = arith.mulf %315, %323 : vector<2x64xf32>
    %cst_52 = arith.constant dense<0.000000e+00> : vector<2xf32>
    %325 = vector.multi_reduction <add>, %324, %cst_52 [1] : vector<2x64xf32> to vector<2xf32>
    %326 = vector.shape_cast %325 : vector<2xf32> to vector<2x1xf32>
    %327 = tpu.concatenate %321, %326 in 1 : vector<2x1xf32>, vector<2x1xf32> -> vector<2x2xf32>
    %328 = vector.extract_strided_slice %32 {offsets = [2, 0], sizes = [1, 2], strides = [1, 1]} : vector<8x384xf32> to vector<1x2xf32>
    %329 = vector.broadcast %328 : vector<1x2xf32> to vector<2x2xf32>
    %330 = arith.addf %327, %329 : vector<2x2xf32>
    %cst_53 = arith.constant dense<0xFF800000> : vector<2xf32>
    %331 = vector.multi_reduction <maximumf>, %330, %cst_53 [1] : vector<2x2xf32> to vector<2xf32>
    %332 = vector.shape_cast %331 : vector<2xf32> to vector<2x1xf32>
    %333 = vector.broadcast %332 : vector<2x1xf32> to vector<2x2xf32>
    %334 = arith.subf %330, %333 : vector<2x2xf32>
    %335 = math.exp %334 : vector<2x2xf32>
    %cst_54 = arith.constant dense<0.000000e+00> : vector<2xf32>
    %336 = vector.multi_reduction <add>, %335, %cst_54 [1] : vector<2x2xf32> to vector<2xf32>
    %337 = vector.shape_cast %336 : vector<2xf32> to vector<2x1xf32>
    %338 = math.log %337 : vector<2x1xf32>
    %339 = arith.addf %338, %332 : vector<2x1xf32>
    %340 = vector.broadcast %339 : vector<2x1xf32> to vector<2x2xf32>
    %341 = arith.subf %330, %340 : vector<2x2xf32>
    %c0_55 = arith.constant 0 : index
    %c0_56 = arith.constant 0 : index
    %342 = vector.load %arg6[%c0_55, %c0_56] : memref<2x2xf32, #tpu.memory_space<vmem>>, vector<2x2xf32>
    tpu.vector_store %arg6[%c0_55, %c0_56], %341 {strides = array<i32>} : memref<2x2xf32, #tpu.memory_space<vmem>>, vector<2x2xf32>,
    return
  }
}

</mosaic_0001>

<llo_original>
// kernel: gru_model_forward.1
$region0: #{gru_model_forward.1}
  #allocation0 [shape = 'u32[]', space=smem, size = 0x4, offset = 0x4, fixed_abs, tag = 'smem constant byte address 0x4 - core index']
  #allocation1 [shape = 'u32[144,128]{1,0:T(1,128)}', space=vmem, size = 0x12000, scoped, tag = 'internal scratch']
  %s0 = inlined_call_operand.vmem [shape: s32[16,1], index: 0, kind: input, shape index: {}]
  %s1 = inlined_call_operand.hbm [shape: f32[50,100], index: 1, kind: input, shape index: {}]
  %s2 = inlined_call_operand.hbm [shape: f32[32,100], index: 2, kind: input, shape index: {}]
  %s3 = inlined_call_operand.hbm [shape: f32[100,384], index: 3, kind: input, shape index: {}]
  %s4 = inlined_call_operand.hbm [shape: bf16[64,384], index: 4, kind: input, shape index: {}]
  %s5 = inlined_call_operand.hbm [shape: f32[8,384], index: 5, kind: input, shape index: {}]
  %s6 = inlined_call_operand.hbm [shape: f32[2,2], index: 6, kind: output, shape index: {}]
  %s7 = sld [smem:[#allocation0]]
  $region54: #{gru_model_forward.1} parent=0
    _
  %s9 = ssub.s32 1, %s7
  %s10 = scalar_select 0, %s9, %s7
  $region1: #{gru_model_forward.1} parent=0
    #allocation2 [shape = 'u8[28672]{0}', space=vmem, size = 0x7000, scoped, tag = 'input window, operand 1, single buffered']
    #allocation3 [shape = 's32[1]{0}', space=sflag, size = 0x4, scoped, tag = 'scoped memory for gru_model_forward.1']
    #allocation4 [shape = 's32[1]{0}', space=sflag, size = 0x4, scoped, tag = 'scoped memory for gru_model_forward.1']
    #allocation5 [shape = 'u8[16384]{0}', space=vmem, size = 0x4000, scoped, tag = 'input window, operand 2, single buffered']
    #allocation6 [shape = 's32[1]{0}', space=sflag, size = 0x4, scoped, tag = 'scoped memory for gru_model_forward.1']
    #allocation7 [shape = 'u8[159744]{0}', space=vmem, size = 0x27000, scoped, tag = 'input window, operand 3, single buffered']
    #allocation8 [shape = 'u8[49152]{0}', space=vmem, size = 0xc000, scoped, tag = 'input window, operand 4, single buffered']
    #allocation9 [shape = 's32[1]{0}', space=sflag, size = 0x4, scoped, tag = 'scoped memory for gru_model_forward.1']
    #allocation10 [shape = 'u8[12288]{0}', space=vmem, size = 0x3000, scoped, tag = 'input window, operand 5, single buffered']
    #allocation11 [shape = 'u8[1024]{0}', space=vmem, size = 0x400, scoped, tag = 'output window, operand 0, single buffered']
    %11 = vsyncpa [#allocation3], 0
    %12 = vsyncpa [#allocation6], 0
    %13 = vsyncpa [#allocation9], 0
    %14 = vsyncpa [#allocation4], 0
    // Predicated region
    $region2: #{gru_model_forward.1} parent=1 // pred_check
      _
    $region3: #{gru_model_forward.1} parent=1 // pred_check_branch
      %16 = sbr.rel (0) target = $region5
    $region4: #{gru_model_forward.1} parent=1 // pred_region
      _
    $region5: #{gru_model_forward.1} parent=1 // pred_fallthru
      _
    // Predicated region
    $region6: #{gru_model_forward.1} parent=1 // pred_check
      _
    $region7: #{gru_model_forward.1} parent=1 // pred_check_branch
      %18 = sbr.rel (0) target = $region9
    $region8: #{gru_model_forward.1} parent=1 // pred_region
      %s20 = ssub.s32 896, 896
      %21 = vsyncadd [#allocation3], %s20
      %s22 = sshll.u32 [#allocation2], 4
      %s23 = int_to_ptr.vmem [resolvable:$true] %s22
      %28 = dma.hbm_to_vmem [thread:$0]  %s1, 896, %s23, [#allocation3], 128, 128, 8
    $region9: #{gru_model_forward.1} parent=1 // pred_fallthru
      _
    // Predicated region
    $region10: #{gru_model_forward.1} parent=1 // pred_check
      _
    $region11: #{gru_model_forward.1} parent=1 // pred_check_branch
      %30 = sbr.rel (0) target = $region13
    $region12: #{gru_model_forward.1} parent=1 // pred_region
      %s32 = ssub.s32 512, 512
      %33 = vsyncadd [#allocation6], %s32
      %s34 = sshll.u32 [#allocation5], 4
      %s35 = int_to_ptr.vmem [resolvable:$true] %s34
      %40 = dma.hbm_to_vmem [thread:$0]  %s2, 512, %s35, [#allocation6], 128, 128, 8
    $region13: #{gru_model_forward.1} parent=1 // pred_fallthru
      _
    // Predicated region
    $region14: #{gru_model_forward.1} parent=1 // pred_check
      _
    $region15: #{gru_model_forward.1} parent=1 // pred_check_branch
      %42 = sbr.rel (0) target = $region17
    $region16: #{gru_model_forward.1} parent=1 // pred_region
      %s44 = ssub.s32 4992, 4992
      %45 = vsyncadd [#allocation6], %s44
      %s46 = sshll.u32 [#allocation7], 4
      %s47 = int_to_ptr.vmem [resolvable:$true] %s46
      %52 = dma.hbm_to_vmem [thread:$0]  %s3, 4992, %s47, [#allocation6], 384, 384, 24
    $region17: #{gru_model_forward.1} parent=1 // pred_fallthru
      _
    // Predicated region
    $region18: #{gru_model_forward.1} parent=1 // pred_check
      _
    $region19: #{gru_model_forward.1} parent=1 // pred_check_branch
      %54 = sbr.rel (0) target = $region21
    $region20: #{gru_model_forward.1} parent=1 // pred_region
      %s56 = ssub.s32 1536, 1536
      %57 = vsyncadd [#allocation9], %s56
      %s58 = sshll.u32 [#allocation8], 4
      %s59 = int_to_ptr.vmem [resolvable:$true] %s58
      %64 = dma.hbm_to_vmem [thread:$0]  %s4, 1536, %s59, [#allocation9], 192, 192, 12
    $region21: #{gru_model_forward.1} parent=1 // pred_fallthru
      _
    // Predicated region
    $region22: #{gru_model_forward.1} parent=1 // pred_check
      _
    $region23: #{gru_model_forward.1} parent=1 // pred_check_branch
      %66 = sbr.rel (0) target = $region25
    $region24: #{gru_model_forward.1} parent=1 // pred_region
      %s68 = ssub.s32 384, 384
      %69 = vsyncadd [#allocation9], %s68
      %s71 = sshll.u32 [#allocation10], 4
      %s72 = int_to_ptr.vmem [resolvable:$true] %s71
      %74 = dma.hbm_to_vmem [thread:$0]  %s5, 384, %s72, [#allocation9]
    $region25: #{gru_model_forward.1} parent=1 // pred_fallthru
      _
    // Predicated region
    $region26: #{gru_model_forward.1} parent=1 // pred_check
      _
    $region27: #{gru_model_forward.1} parent=1 // pred_check_branch
      %76 = sbr.rel (0) target = $region29
    $region28: #{gru_model_forward.1} parent=1 // pred_region
      %77 = dma.done [#allocation3], 896
    $region29: #{gru_model_forward.1} parent=1 // pred_fallthru
      _
    // Predicated region
    $region30: #{gru_model_forward.1} parent=1 // pred_check
      _
    $region31: #{gru_model_forward.1} parent=1 // pred_check_branch
      %79 = sbr.rel (0) target = $region33
    $region32: #{gru_model_forward.1} parent=1 // pred_region
      %80 = dma.done [#allocation6], 512
    $region33: #{gru_model_forward.1} parent=1 // pred_fallthru
      _
    // Predicated region
    $region34: #{gru_model_forward.1} parent=1 // pred_check
      _
    $region35: #{gru_model_forward.1} parent=1 // pred_check_branch
      %82 = sbr.rel (0) target = $region37
    $region36: #{gru_model_forward.1} parent=1 // pred_region
      %83 = dma.done [#allocation6], 4992
    $region37: #{gru_model_forward.1} parent=1 // pred_fallthru
      _
    // Predicated region
    $region38: #{gru_model_forward.1} parent=1 // pred_check
      _
    $region39: #{gru_model_forward.1} parent=1 // pred_check_branch
      %85 = sbr.rel (0) target = $region41
    $region40: #{gru_model_forward.1} parent=1 // pred_region
      %86 = dma.done [#allocation9], 1536
    $region41: #{gru_model_forward.1} parent=1 // pred_fallthru
      _
    // Predicated region
    $region42: #{gru_model_forward.1} parent=1 // pred_check
      _
    $region43: #{gru_model_forward.1} parent=1 // pred_check_branch
      %88 = sbr.rel (0) target = $region45
    $region44: #{gru_model_forward.1} parent=1 // pred_region
      %89 = dma.done [#allocation9], 384
    $region45: #{gru_model_forward.1} parent=1 // pred_fallthru
      _
    %v91 = vld [vmem:[%s0] sm:$0xff]
    %v92 = vld [vmem:[%s0 + $0x8] sm:$0xff]
    %v93 = vlaneseq
    %v94 = vand.u32 %v93, 127
    %95 = vset.pattern.permute.xlu0 0
    %96 = vperm.xlu0 %95, %v91
    %v97 = vpop.permute.xlu0 %96
    %98 = vset.pattern.permute.xlu0 0
    %99 = vperm.xlu0 %98, %v92
    %v100 = vpop.permute.xlu0 %99
    %vm101 = vcmp.eq.s32.totalorder %v97, %v94
    %vm102 = vcmp.eq.s32.totalorder %v100, %v94
    %v103 = vsel %vm101, 1, 0
    %v104 = vsel %vm102, 1, 0
    %v105 = vcvt.s32.f32 %v103
    %v106 = vcvt.s32.f32 %v104
    %v107 = vld [vmem:[#allocation2] sm:$0xff]
    %v108 = vld [vmem:[#allocation2 + $0x8] sm:$0xff]
    %v109 = vld [vmem:[#allocation2 + $0x10] sm:$0xff]
    %v110 = vld [vmem:[#allocation2 + $0x18] sm:$0xff]
    %v111 = vld [vmem:[#allocation2 + $0x20] sm:$0xff]
    %v112 = vld [vmem:[#allocation2 + $0x28] sm:$0xff]
    %v113 = vld [vmem:[#allocation2 + $0x30] sm:$0x3]
    %vm114 = vcmask 408576
    %v116 = vsel %vm114, %v105, 0
    %v119 = vsel %vm114, %v106, 0
    %vm121 = vcmask 1041408
    %v123 = vsel %vm121, %v113, 0
    %125 = vmatprep.subr.mxu0 0.0
    %126 = vmatpush1.msra.mxu0 0.0
    %127 = vmatprep.subr.mxu0 0.0
    %128 = vmatpush1.msra.mxu0 0.0
    %129 = vmatprep.subr.mxu0 0.0
    %130 = vmatpush1.msra.mxu0 0.0
    %131 = vmatprep.subr.mxu0 0.0
    %132 = vmatpush1.msra.mxu0 0.0
    %133 = vmatprep.subr.mxu0 0.0
    %134 = vmatpush1.msra.mxu0 0.0
    %135 = vmatprep.subr.mxu0 0.0
    %136 = vmatpush1.msra.mxu0 0.0
    %137 = vmatprep.subr.mxu0 0.0
    %138 = vmatpush1.msra.mxu0 0.0
    %139 = vmatprep.subr.mxu0 0.0
    %140 = vmatpush1.msra.mxu0 0.0
    %141 = vmatprep.subr.mxu0 0.0
    %142 = vmatpush1.msra.mxu0 0.0
    %143 = vmatprep.subr.mxu0 0.0
    %144 = vmatpush1.msra.mxu0 %v123
    %145 = vmatprep.subr.mxu0 0.0
    %146 = vmatpush1.msra.mxu0 %v112
    %147 = vmatprep.subr.mxu0 0.0
    %148 = vmatpush1.msra.mxu0 %v111
    %149 = vmatprep.subr.mxu0 0.0
    %150 = vmatpush1.msra.mxu0 %v110
    %151 = vmatprep.subr.mxu0 0.0
    %152 = vmatpush1.msra.mxu0 %v109
    %153 = vmatprep.subr.mxu0 0.0
    %154 = vmatpush1.msra.mxu0 %v108
    %155 = vmatprep.subr.mxu0 0.0
    %156 = vmatpush1.msra.mxu0 %v107
    %157 = vmatprep.subr.mxu0 0.0
    %158 = vmatpush2.msra.mxu0 0.0
    %159 = vmatprep.subr.mxu0 0.0
    %160 = vmatpush2.msra.mxu0 0.0
    %161 = vmatprep.subr.mxu0 0.0
    %162 = vmatpush2.msra.mxu0 0.0
    %163 = vmatprep.subr.mxu0 0.0
    %164 = vmatpush2.msra.mxu0 0.0
    %165 = vmatprep.subr.mxu0 0.0
    %166 = vmatpush2.msra.mxu0 0.0
    %167 = vmatprep.subr.mxu0 0.0
    %168 = vmatpush2.msra.mxu0 0.0
    %169 = vmatprep.subr.mxu0 0.0
    %170 = vmatpush2.msra.mxu0 0.0
    %171 = vmatprep.subr.mxu0 0.0
    %172 = vmatpush2.msra.mxu0 0.0
    %173 = vmatprep.subr.mxu0 0.0
    %174 = vmatpush2.msra.mxu0 0.0
    %175 = vmatprep.subr.mxu0 0.0
    %176 = vmatpush2.msra.mxu0 0.0
    %177 = vmatprep.subr.mxu0 0.0
    %178 = vmatpush2.msra.mxu0 0.0
    %179 = vmatprep.subr.mxu0 0.0
    %180 = vmatpush2.msra.mxu0 0.0
    %181 = vmatprep.subr.mxu0 0.0
    %182 = vmatpush2.msra.mxu0 0.0
    %183 = vmatprep.subr.mxu0 0.0
    %184 = vmatpush2.msra.mxu0 0.0
    %185 = vmatprep.subr.mxu0 0.0
    %186 = vmatpush2.msra.mxu0 0.0
    %187 = vmatprep.subr.mxu0 0.0
    %188 = vmatpush2.msra.mxu0 0.0
    %189 = vmatprep.mubr.f32.mxu0 0.0
    %190 = vmatmul.mubr.f32.gmra.mxu0 %v116
    %v191 = vpop.f32.mrf.mxu0
    %v192 = vadd.f32 0.0, %v191
    %v193 = vpop.f32.mrf.mxu0
    %194 = vmatprep.mubr.f32.mxu0 0.0
    %195 = vmatmul.mubr.f32.gmra.mxu0 %v119
    %v196 = vpop.f32.mrf.mxu0
    %v197 = vadd.f32 0.0, %v196
    %v198 = vpop.f32.mrf.mxu0
    %199 = vdwg.mxu0
    %vm200 = vcmask 818176
    %v201 = vsel %vm200, %v192, 0.0
    %v202 = vsel %vm200, %v197, 0.0
    %v203 = vadd.f32 %v201, %v202
    %204 = vadd.xlane.f32.xlu0 %v203
    %v205 = vpop.xlane.xlu0 %204
    %v206 = vrot.slane %v205, 4
    %v207 = vadd.f32 %v205, %v206
    %v208 = vrot.slane %v207, 2
    %v209 = vadd.f32 %v207, %v208
    %v210 = vrot.slane %v209, 1
    %v211 = vadd.f32 %v209, %v210
    %s212 = vtos %v211
    %v213 = vmul.f32 %v192, %v192
    %v214 = vmul.f32 %v197, %v197
    %v215 = vsel %vm200, %v213, 0.0
    %v216 = vsel %vm200, %v214, 0.0
    %v217 = vadd.f32 %v215, %v216
    %218 = vadd.xlane.f32.xlu0 %v217
    %v219 = vpop.xlane.xlu0 %218
    %v220 = vrot.slane %v219, 4
    %v221 = vadd.f32 %v219, %v220
    %v222 = vrot.slane %v221, 2
    %v223 = vadd.f32 %v221, %v222
    %v224 = vrot.slane %v223, 1
    %v225 = vadd.f32 %v223, %v224
    %s226 = vtos %v225
    %v227 = vrcp.pop 1600.0
    %s228 = vtos %v227
    %s229 = smul.f32 %s212, %s228
    %v230 = vrcp.pop 1600.0
    %s231 = vtos %v230
    %s232 = smul.f32 %s226, %s231
    %s233 = smul.f32 %s229, %s229
    %s234 = ssub.f32 %s232, %s233
    %v235 = vld [vmem:[#allocation5] sm:$0xff]
    %v236 = vld [vmem:[#allocation5 + $0x8] sm:$0xff]
    %v237 = vld [vmem:[#allocation5 + $0x10] sm:$0xff]
    %v238 = vld [vmem:[#allocation5 + $0x18] sm:$0xff]
    %v239 = vstv %s229
    %v240 = vsub.f32 %v192, %v239
    %v241 = vsub.f32 %v197, %v239
    %s242 = sadd.f32 %s234, 1e-05
    %v243 = vstv %s242
    %v244 = vrsqrt.pop %v243
    %s245 = vtos %v244
    %v246 = vstv %s245
    %v247 = vmul.f32 %v240, %v246
    %v248 = vmul.f32 %v241, %v246
    %v249 = vmul.f32 %v247, %v235
    %v250 = vmul.f32 %v248, %v236
    %v251 = vadd.f32 %v249, %v237
    %v252 = vadd.f32 %v250, %v238
    %v253 = vld [vmem:[#allocation10] sm:$0xff]
    %v254 = vld [vmem:[#allocation10 + $0x8] sm:$0xff]
    %v255 = vld [vmem:[#allocation10 + $0x10] sm:$0xff]
    %v256 = vld [vmem:[#allocation7] sm:$0xff]
    %v257 = vld [vmem:[#allocation7 + $0x8] sm:$0xff]
    %v258 = vld [vmem:[#allocation7 + $0x10] sm:$0xff]
    %v259 = vld [vmem:[#allocation7 + $0x18] sm:$0xff]
    %v260 = vld [vmem:[#allocation7 + $0x20] sm:$0xff]
    %v261 = vld [vmem:[#allocation7 + $0x28] sm:$0xff]
    %v262 = vld [vmem:[#allocation7 + $0x30] sm:$0xff]
    %v263 = vld [vmem:[#allocation7 + $0x38] sm:$0xff]
    %v264 = vld [vmem:[#allocation7 + $0x40] sm:$0xff]
    %v265 = vld [vmem:[#allocation7 + $0x48] sm:$0xff]
    %v266 = vld [vmem:[#allocation7 + $0x50] sm:$0xff]
    %v267 = vld [vmem:[#allocation7 + $0x58] sm:$0xff]
    %v268 = vld [vmem:[#allocation7 + $0x60] sm:$0xff]
    %v269 = vld [vmem:[#allocation7 + $0x68] sm:$0xff]
    %v270 = vld [vmem:[#allocation7 + $0x70] sm:$0xff]
    %v271 = vld [vmem:[#allocation7 + $0x78] sm:$0xff]
    %v272 = vld [vmem:[#allocation7 + $0x80] sm:$0xff]
    %v273 = vld [vmem:[#allocation7 + $0x88] sm:$0xff]
    %v274 = vld [vmem:[#allocation7 + $0x90] sm:$0xff]
    %v275 = vld [vmem:[#allocation7 + $0x98] sm:$0xff]
    %v276 = vld [vmem:[#allocation7 + $0xa0] sm:$0xff]
    %v277 = vld [vmem:[#allocation7 + $0xa8] sm:$0xff]
    %v278 = vld [vmem:[#allocation7 + $0xb0] sm:$0xff]
    %v279 = vld [vmem:[#allocation7 + $0xb8] sm:$0xff]
    %v280 = vld [vmem:[#allocation7 + $0xc0] sm:$0xff]
    %v281 = vld [vmem:[#allocation7 + $0xc8] sm:$0xff]
    %v282 = vld [vmem:[#allocation7 + $0xd0] sm:$0xff]
    %v283 = vld [vmem:[#allocation7 + $0xd8] sm:$0xff]
    %v284 = vld [vmem:[#allocation7 + $0xe0] sm:$0xff]
    %v285 = vld [vmem:[#allocation7 + $0xe8] sm:$0xff]
    %v286 = vld [vmem:[#allocation7 + $0xf0] sm:$0xff]
    %v287 = vld [vmem:[#allocation7 + $0xf8] sm:$0xff]
    %v288 = vld [vmem:[#allocation7 + $0x100] sm:$0xff]
    %v289 = vld [vmem:[#allocation7 + $0x108] sm:$0xff]
    %v290 = vld [vmem:[#allocation7 + $0x110] sm:$0xff]
    %v291 = vld [vmem:[#allocation7 + $0x118] sm:$0xff]
    %v292 = vld [vmem:[#allocation7 + $0x120] sm:$0xf]
    %v293 = vld [vmem:[#allocation7 + $0x128] sm:$0xf]
    %v294 = vld [vmem:[#allocation7 + $0x130] sm:$0xf]
    %v295 = vlaneseq
    %v296 = vshrl.u32 %v295, 7
    %v297 = vsub.s32 0, %v296
    %v298 = vrot.slane %v253, %v297
    %v299 = vlaneseq
    %v300 = vshrl.u32 %v299, 7
    %v301 = vsub.s32 0, %v300
    %v302 = vrot.slane %v254, %v301
    %v303 = vlaneseq
    %v304 = vshrl.u32 %v303, 7
    %v305 = vsub.s32 0, %v304
    %v306 = vrot.slane %v255, %v305
    %v308 = vsel %vm200, %v251, 0
    %v311 = vsel %vm200, %v252, 0
    %vm313 = vcmask 1043456
    %v315 = vsel %vm313, %v292, 0
    %v318 = vsel %vm313, %v293, 0
    %v321 = vsel %vm313, %v294, 0
    %323 = vmatprep.subr.mxu0 0.0
    %324 = vmatpush1.msra.mxu0 0.0
    %325 = vmatprep.subr.mxu0 0.0
    %326 = vmatpush1.msra.mxu0 0.0
    %327 = vmatprep.subr.mxu0 0.0
    %328 = vmatpush1.msra.mxu0 0.0
    %329 = vmatprep.subr.mxu0 %v318
    %330 = vmatpush1.msra.mxu0 %v315
    %331 = vmatprep.subr.mxu0 %v290
    %332 = vmatpush1.msra.mxu0 %v289
    %333 = vmatprep.subr.mxu0 %v287
    %334 = vmatpush1.msra.mxu0 %v286
    %335 = vmatprep.subr.mxu0 %v284
    %336 = vmatpush1.msra.mxu0 %v283
    %337 = vmatprep.subr.mxu0 %v281
    %338 = vmatpush1.msra.mxu0 %v280
    %339 = vmatprep.subr.mxu0 %v278
    %340 = vmatpush1.msra.mxu0 %v277
    %341 = vmatprep.subr.mxu0 %v275
    %342 = vmatpush1.msra.mxu0 %v274
    %343 = vmatprep.subr.mxu0 %v272
    %344 = vmatpush1.msra.mxu0 %v271
    %345 = vmatprep.subr.mxu0 %v269
    %346 = vmatpush1.msra.mxu0 %v268
    %347 = vmatprep.subr.mxu0 %v266
    %348 = vmatpush1.msra.mxu0 %v265
    %349 = vmatprep.subr.mxu0 %v263
    %350 = vmatpush1.msra.mxu0 %v262
    %351 = vmatprep.subr.mxu0 %v260
    %352 = vmatpush1.msra.mxu0 %v259
    %353 = vmatprep.subr.mxu0 %v257
    %354 = vmatpush1.msra.mxu0 %v256
    %355 = vmatprep.subr.mxu0 0.0
    %356 = vmatpush2.msra.mxu0 0.0
    %357 = vmatprep.subr.mxu0 0.0
    %358 = vmatpush2.msra.mxu0 0.0
    %359 = vmatprep.subr.mxu0 0.0
    %360 = vmatpush2.msra.mxu0 0.0
    %361 = vmatprep.subr.mxu0 0.0
    %362 = vmatpush2.msra.mxu0 0.0
    %363 = vmatprep.subr.mxu0 0.0
    %364 = vmatpush2.msra.mxu0 0.0
    %365 = vmatprep.subr.mxu0 0.0
    %366 = vmatpush2.msra.mxu0 0.0
    %367 = vmatprep.subr.mxu0 0.0
    %368 = vmatpush2.msra.mxu0 0.0
    %369 = vmatprep.subr.mxu0 0.0
    %370 = vmatpush2.msra.mxu0 0.0
    %371 = vmatprep.subr.mxu0 0.0
    %372 = vmatpush2.msra.mxu0 0.0
    %373 = vmatprep.subr.mxu0 0.0
    %374 = vmatpush2.msra.mxu0 0.0
    %375 = vmatprep.subr.mxu0 0.0
    %376 = vmatpush2.msra.mxu0 0.0
    %377 = vmatprep.subr.mxu0 0.0
    %378 = vmatpush2.msra.mxu0 0.0
    %379 = vmatprep.subr.mxu0 0.0
    %380 = vmatpush2.msra.mxu0 0.0
    %381 = vmatprep.subr.mxu0 0.0
    %382 = vmatpush2.msra.mxu0 0.0
    %383 = vmatprep.subr.mxu0 0.0
    %384 = vmatpush2.msra.mxu0 0.0
    %385 = vmatprep.subr.mxu0 0.0
    %386 = vmatpush2.msra.mxu0 0.0
    %387 = vmatprep.mubr.f32.mxu0 0.0
    %388 = vmatmul.mubr.f32.gmra.mxu0 %v308
    %v389 = vpop.f32.mrf.mxu0
    %v390 = vadd.f32 %v298, %v389
    %v391 = vpop.f32.mrf.mxu0
    %v392 = vadd.f32 %v302, %v391
    %393 = vmatprep.mubr.f32.mxu0 0.0
    %394 = vmatmul.mubr.f32.gmra.mxu0 %v311
    %v395 = vpop.f32.mrf.mxu0
    %v396 = vadd.f32 %v298, %v395
    %v397 = vpop.f32.mrf.mxu0
    %v398 = vadd.f32 %v302, %v397
    %399 = vdwg.mxu0
    %400 = vmatprep.subr.mxu0 0.0
    %401 = vmatpush1.msra.mxu0 0.0
    %402 = vmatprep.subr.mxu0 0.0
    %403 = vmatpush1.msra.mxu0 0.0
    %404 = vmatprep.subr.mxu0 0.0
    %405 = vmatpush1.msra.mxu0 0.0
    %406 = vmatprep.subr.mxu0 0.0
    %407 = vmatpush1.msra.mxu0 %v321
    %408 = vmatprep.subr.mxu0 0.0
    %409 = vmatpush1.msra.mxu0 %v291
    %410 = vmatprep.subr.mxu0 0.0
    %411 = vmatpush1.msra.mxu0 %v288
    %412 = vmatprep.subr.mxu0 0.0
    %413 = vmatpush1.msra.mxu0 %v285
    %414 = vmatprep.subr.mxu0 0.0
    %415 = vmatpush1.msra.mxu0 %v282
    %416 = vmatprep.subr.mxu0 0.0
    %417 = vmatpush1.msra.mxu0 %v279
    %418 = vmatprep.subr.mxu0 0.0
    %419 = vmatpush1.msra.mxu0 %v276
    %420 = vmatprep.subr.mxu0 0.0
    %421 = vmatpush1.msra.mxu0 %v273
    %422 = vmatprep.subr.mxu0 0.0
    %423 = vmatpush1.msra.mxu0 %v270
    %424 = vmatprep.subr.mxu0 0.0
    %425 = vmatpush1.msra.mxu0 %v267
    %426 = vmatprep.subr.mxu0 0.0
    %427 = vmatpush1.msra.mxu0 %v264
    %428 = vmatprep.subr.mxu0 0.0
    %429 = vmatpush1.msra.mxu0 %v261
    %430 = vmatprep.subr.mxu0 0.0
    %431 = vmatpush1.msra.mxu0 %v258
    %432 = vmatprep.subr.mxu0 0.0
    %433 = vmatpush2.msra.mxu0 0.0
    %434 = vmatprep.subr.mxu0 0.0
    %435 = vmatpush2.msra.mxu0 0.0
    %436 = vmatprep.subr.mxu0 0.0
    %437 = vmatpush2.msra.mxu0 0.0
    %438 = vmatprep.subr.mxu0 0.0
    %439 = vmatpush2.msra.mxu0 0.0
    %440 = vmatprep.subr.mxu0 0.0
    %441 = vmatpush2.msra.mxu0 0.0
    %442 = vmatprep.subr.mxu0 0.0
    %443 = vmatpush2.msra.mxu0 0.0
    %444 = vmatprep.subr.mxu0 0.0
    %445 = vmatpush2.msra.mxu0 0.0
    %446 = vmatprep.subr.mxu0 0.0
    %447 = vmatpush2.msra.mxu0 0.0
    %448 = vmatprep.subr.mxu0 0.0
    %449 = vmatpush2.msra.mxu0 0.0
    %450 = vmatprep.subr.mxu0 0.0
    %451 = vmatpush2.msra.mxu0 0.0
    %452 = vmatprep.subr.mxu0 0.0
    %453 = vmatpush2.msra.mxu0 0.0
    %454 = vmatprep.subr.mxu0 0.0
    %455 = vmatpush2.msra.mxu0 0.0
    %456 = vmatprep.subr.mxu0 0.0
    %457 = vmatpush2.msra.mxu0 0.0
    %458 = vmatprep.subr.mxu0 0.0
    %459 = vmatpush2.msra.mxu0 0.0
    %460 = vmatprep.subr.mxu0 0.0
    %461 = vmatpush2.msra.mxu0 0.0
    %462 = vmatprep.subr.mxu0 0.0
    %463 = vmatpush2.msra.mxu0 0.0
    %464 = vmatprep.mubr.f32.mxu0 0.0
    %465 = vmatmul.mubr.f32.gmra.mxu0 %v308
    %v466 = vpop.f32.mrf.mxu0
    %v467 = vadd.f32 %v306, %v466
    %v468 = vpop.f32.mrf.mxu0
    %469 = vmatprep.mubr.f32.mxu0 0.0
    %470 = vmatmul.mubr.f32.gmra.mxu0 %v311
    %v471 = vpop.f32.mrf.mxu0
    %v472 = vadd.f32 %v306, %v471
    %v473 = vpop.f32.mrf.mxu0
    %474 = vdwg.mxu0
    %vm475 = vcmp.gt.f32.partialorder %v253, 0.5
    %vm476 = vcmp.gt.f32.partialorder %v254, 0.5
    %vm477 = vcmp.gt.f32.partialorder %v255, 0.5
    %v481 = vrot.slane %v396, 7
    %v482 = vrot.slane %v398, 7
    %v483 = vrot.slane %v472, 7
    %vm487 = vcmask 1040384
    %v488 = vsel %vm487, %v390, %v481
    %v489 = vsel %vm487, %v392, %v482
    %v490 = vsel %vm487, %v467, %v483
    %v494 = vrot.slane %v390, 1
    %v495 = vrot.slane %v392, 1
    %v496 = vrot.slane %v467, 1
    %v500 = vsel %vm487, %v494, %v396
    %v501 = vsel %vm487, %v495, %v398
    %v502 = vsel %vm487, %v496, %v472
    %v503 = vrot.slane %v390, 2
    %v504 = vrot.slane %v392, 2
    %v505 = vrot.slane %v467, 2
    %v509 = vrot.slane %v396, 1
    %v510 = vrot.slane %v398, 1
    %v511 = vrot.slane %v472, 1
    %v515 = vsel %vm487, %v503, %v509
    %v516 = vsel %vm487, %v504, %v510
    %v517 = vsel %vm487, %v505, %v511
    %v518 = vrot.slane %v390, 3
    %v519 = vrot.slane %v392, 3
    %v520 = vrot.slane %v467, 3
    %v524 = vrot.slane %v396, 2
    %v525 = vrot.slane %v398, 2
    %v526 = vrot.slane %v472, 2
    %v530 = vsel %vm487, %v518, %v524
    %v531 = vsel %vm487, %v519, %v525
    %v532 = vsel %vm487, %v520, %v526
    %v533 = vrot.slane %v390, 4
    %v534 = vrot.slane %v392, 4
    %v535 = vrot.slane %v467, 4
    %v539 = vrot.slane %v396, 3
    %v540 = vrot.slane %v398, 3
    %v541 = vrot.slane %v472, 3
    %v545 = vsel %vm487, %v533, %v539
    %v546 = vsel %vm487, %v534, %v540
    %v547 = vsel %vm487, %v535, %v541
    %v548 = vrot.slane %v390, 5
    %v549 = vrot.slane %v392, 5
    %v550 = vrot.slane %v467, 5
    %v554 = vrot.slane %v396, 4
    %v555 = vrot.slane %v398, 4
    %v556 = vrot.slane %v472, 4
    %v560 = vsel %vm487, %v548, %v554
    %v561 = vsel %vm487, %v549, %v555
    %v562 = vsel %vm487, %v550, %v556
    %v563 = vrot.slane %v390, 6
    %v564 = vrot.slane %v392, 6
    %v565 = vrot.slane %v467, 6
    %v569 = vrot.slane %v396, 5
    %v570 = vrot.slane %v398, 5
    %v571 = vrot.slane %v472, 5
    %v575 = vsel %vm487, %v563, %v569
    %v576 = vsel %vm487, %v564, %v570
    %v577 = vsel %vm487, %v565, %v571
    %v578 = vrot.slane %v390, 7
    %v579 = vrot.slane %v392, 7
    %v580 = vrot.slane %v467, 7
    %v584 = vrot.slane %v396, 6
    %v585 = vrot.slane %v398, 6
    %v586 = vrot.slane %v472, 6
    %v590 = vsel %vm487, %v578, %v584
    %v591 = vsel %vm487, %v579, %v585
    %v592 = vsel %vm487, %v580, %v586
    %v596 = vrot.slane %v488, 3
    %v597 = vrot.slane %v489, 3
    %v598 = vrot.slane %v490, 3
    %v605 = vrot.slane %v590, 3
    %v606 = vrot.slane %v591, 3
    %v607 = vrot.slane %v592, 3
    %v611 = vsel %vm475, %v596, %v605
    %v612 = vsel %vm476, %v597, %v606
    %v613 = vsel %vm477, %v598, %v607
    %v617 = vrot.slane %v500, 3
    %v618 = vrot.slane %v501, 3
    %v619 = vrot.slane %v502, 3
    %v626 = vrot.slane %v575, 3
    %v627 = vrot.slane %v576, 3
    %v628 = vrot.slane %v577, 3
    %v632 = vsel %vm475, %v617, %v626
    %v633 = vsel %vm476, %v618, %v627
    %v634 = vsel %vm477, %v619, %v628
    %v638 = vrot.slane %v515, 3
    %v639 = vrot.slane %v516, 3
    %v640 = vrot.slane %v517, 3
    %v647 = vrot.slane %v560, 3
    %v648 = vrot.slane %v561, 3
    %v649 = vrot.slane %v562, 3
    %v653 = vsel %vm475, %v638, %v647
    %v654 = vsel %vm476, %v639, %v648
    %v655 = vsel %vm477, %v640, %v649
    %v659 = vrot.slane %v530, 3
    %v660 = vrot.slane %v531, 3
    %v661 = vrot.slane %v532, 3
    %v668 = vrot.slane %v545, 3
    %v669 = vrot.slane %v546, 3
    %v670 = vrot.slane %v547, 3
    %v674 = vsel %vm475, %v659, %v668
    %v675 = vsel %vm476, %v660, %v669
    %v676 = vsel %vm477, %v661, %v670
    %v677 = vsel %vm475, %v668, %v659
    %v678 = vsel %vm476, %v669, %v660
    %v679 = vsel %vm477, %v670, %v661
    %v680 = vsel %vm475, %v647, %v638
    %v681 = vsel %vm476, %v648, %v639
    %v682 = vsel %vm477, %v649, %v640
    %v683 = vsel %vm475, %v626, %v617
    %v684 = vsel %vm476, %v627, %v618
    %v685 = vsel %vm477, %v628, %v619
    %v686 = vsel %vm475, %v605, %v596
    %v687 = vsel %vm476, %v606, %v597
    %v688 = vsel %vm477, %v607, %v598
    %v689 = vld [vmem:[#allocation8] sm:$0xff]
    %v690 = vld [vmem:[#allocation8 + $0x8] sm:$0xf]
    %v691 = vld [vmem:[#allocation8 + $0xc] sm:$0xff]
    %v692 = vld [vmem:[#allocation8 + $0x14] sm:$0xf]
    %v693 = vld [vmem:[#allocation8 + $0x18] sm:$0xff]
    %v694 = vld [vmem:[#allocation8 + $0x20] sm:$0xf]
    %v695 = vld [vmem:[#allocation8 + $0x24] sm:$0xff]
    %v696 = vld [vmem:[#allocation8 + $0x2c] sm:$0xf]
    %v697 = vld [vmem:[#allocation8 + $0x30] sm:$0xff]
    %v698 = vld [vmem:[#allocation8 + $0x38] sm:$0xf]
    %v699 = vld [vmem:[#allocation8 + $0x3c] sm:$0xff]
    %v700 = vld [vmem:[#allocation8 + $0x44] sm:$0xf]
    %v701 = vld [vmem:[#allocation8 + $0x48] sm:$0xff]
    %v702 = vld [vmem:[#allocation8 + $0x50] sm:$0xf]
    %v703 = vld [vmem:[#allocation8 + $0x54] sm:$0xff]
    %v704 = vld [vmem:[#allocation8 + $0x5c] sm:$0xf]
    %v721 = vunpack.c.l.b16 %v689
    %v722 = vunpack.c.h.b16 %v689
    %v723 = vunpack.c.l.b16 %v690
    %v724 = vunpack.c.l.b16 %v691
    %v725 = vunpack.c.h.b16 %v691
    %v726 = vunpack.c.l.b16 %v692
    %v727 = vunpack.c.l.b16 %v693
    %v728 = vunpack.c.h.b16 %v693
    %v729 = vunpack.c.l.b16 %v694
    %v730 = vunpack.c.l.b16 %v695
    %v731 = vunpack.c.h.b16 %v695
    %v732 = vunpack.c.l.b16 %v696
    %v733 = vunpack.c.l.b16 %v697
    %v734 = vunpack.c.h.b16 %v697
    %v735 = vunpack.c.l.b16 %v698
    %v736 = vunpack.c.l.b16 %v699
    %v737 = vunpack.c.h.b16 %v699
    %v738 = vunpack.c.l.b16 %v700
    %v739 = vunpack.c.l.b16 %v701
    %v740 = vunpack.c.h.b16 %v701
    %v741 = vunpack.c.l.b16 %v702
    %v742 = vunpack.c.l.b16 %v703
    %v743 = vunpack.c.h.b16 %v703
    %v744 = vunpack.c.l.b16 %v704
    %v745 = vpack.c.b16 %v724, %v721
    %v746 = vpack.c.b16 %v725, %v722
    %v747 = vpack.c.b16 %v726, %v723
    %v748 = vpack.c.b16 %v730, %v727
    %v749 = vpack.c.b16 %v731, %v728
    %v750 = vpack.c.b16 %v732, %v729
    %v751 = vpack.c.b16 %v736, %v733
    %v752 = vpack.c.b16 %v737, %v734
    %v753 = vpack.c.b16 %v738, %v735
    %v754 = vpack.c.b16 %v742, %v739
    %v755 = vpack.c.b16 %v743, %v740
    %v756 = vpack.c.b16 %v744, %v741
    %vm769 = vcmask 523264
    %v771 = vsel %vm769, 0, 0
    %773 = vmatprep.subr.bf16.mxu0 0
    %774 = vmatpush1.bf16.msra.mxu0 0
    %775 = vmatprep.subr.bf16.mxu0 0
    %776 = vmatpush1.bf16.msra.mxu0 0
    %777 = vmatprep.subr.bf16.mxu0 0
    %778 = vmatpush1.bf16.msra.mxu0 0
    %779 = vmatprep.subr.bf16.mxu0 0
    %780 = vmatpush1.bf16.msra.mxu0 0
    %781 = vmatprep.subr.bf16.mxu0 %v755
    %782 = vmatpush1.bf16.msra.mxu0 %v754
    %783 = vmatprep.subr.bf16.mxu0 %v752
    %784 = vmatpush1.bf16.msra.mxu0 %v751
    %785 = vmatprep.subr.bf16.mxu0 %v749
    %786 = vmatpush1.bf16.msra.mxu0 %v748
    %787 = vmatprep.subr.bf16.mxu0 %v746
    %788 = vmatpush1.bf16.msra.mxu0 %v745
    %789 = vmatprep.subr.bf16.mxu0 0
    %790 = vmatpush2.bf16.msra.mxu0 0
    %791 = vmatprep.subr.bf16.mxu0 0
    %792 = vmatpush2.bf16.msra.mxu0 0
    %793 = vmatprep.subr.bf16.mxu0 0
    %794 = vmatpush2.bf16.msra.mxu0 0
    %795 = vmatprep.subr.bf16.mxu0 0
    %796 = vmatpush2.bf16.msra.mxu0 0
    %797 = vmatprep.subr.bf16.mxu0 0
    %798 = vmatpush2.bf16.msra.mxu0 0
    %799 = vmatprep.subr.bf16.mxu0 0
    %800 = vmatpush2.bf16.msra.mxu0 0
    %801 = vmatprep.subr.bf16.mxu0 0
    %802 = vmatpush2.bf16.msra.mxu0 0
    %803 = vmatprep.subr.bf16.mxu0 0
    %804 = vmatpush2.bf16.msra.mxu0 0
    %805 = vmatprep.mubr.bf16.mxu0 0
    %806 = vmatmul.mubr.bf16.gmra.mxu0 %v771
    %v807 = vpop.f32.mrf.mxu0
    %v808 = vadd.f32 0.0, %v807
    %v809 = vpop.f32.mrf.mxu0
    %v810 = vadd.f32 0.0, %v809
    %v811 = vpop.f32.mrf.mxu0
    %v812 = vpop.f32.mrf.mxu0
    %813 = vdwg.mxu0
    %814 = vmatprep.subr.bf16.mxu0 0
    %815 = vmatpush1.bf16.msra.mxu0 0
    %816 = vmatprep.subr.bf16.mxu0 0
    %817 = vmatpush1.bf16.msra.mxu0 0
    %818 = vmatprep.subr.bf16.mxu0 0
    %819 = vmatpush1.bf16.msra.mxu0 0
    %820 = vmatprep.subr.bf16.mxu0 0
    %821 = vmatpush1.bf16.msra.mxu0 0
    %822 = vmatprep.subr.bf16.mxu0 0
    %823 = vmatpush1.bf16.msra.mxu0 %v756
    %824 = vmatprep.subr.bf16.mxu0 0
    %825 = vmatpush1.bf16.msra.mxu0 %v753
    %826 = vmatprep.subr.bf16.mxu0 0
    %827 = vmatpush1.bf16.msra.mxu0 %v750
    %828 = vmatprep.subr.bf16.mxu0 0
    %829 = vmatpush1.bf16.msra.mxu0 %v747
    %830 = vmatprep.subr.bf16.mxu0 0
    %831 = vmatpush2.bf16.msra.mxu0 0
    %832 = vmatprep.subr.bf16.mxu0 0
    %833 = vmatpush2.bf16.msra.mxu0 0
    %834 = vmatprep.subr.bf16.mxu0 0
    %835 = vmatpush2.bf16.msra.mxu0 0
    %836 = vmatprep.subr.bf16.mxu0 0
    %837 = vmatpush2.bf16.msra.mxu0 0
    %838 = vmatprep.subr.bf16.mxu0 0
    %839 = vmatpush2.bf16.msra.mxu0 0
    %840 = vmatprep.subr.bf16.mxu0 0
    %841 = vmatpush2.bf16.msra.mxu0 0
    %842 = vmatprep.subr.bf16.mxu0 0
    %843 = vmatpush2.bf16.msra.mxu0 0
    %844 = vmatprep.subr.bf16.mxu0 0
    %845 = vmatpush2.bf16.msra.mxu0 0
    %846 = vmatprep.mubr.bf16.mxu0 0
    %847 = vmatmul.mubr.bf16.gmra.mxu0 %v771
    %v848 = vpop.f32.mrf.mxu0
    %v849 = vadd.f32 0.0, %v848
    %v850 = vpop.f32.mrf.mxu0
    %v851 = vpop.f32.mrf.mxu0
    %v852 = vpop.f32.mrf.mxu0
    %853 = vdwg.mxu0
    %v855 = vrot.slane %v808, 3
    %v857 = vadd.f32 %v611, %v855
    %v858 = vxor.u32 %v857, 2147483648
    %v859 = vmul.f32 %v858, 1.442695
    %v860 = vpow.pop %v859
    %v861 = vadd.f32 %v860, 1.0
    %v862 = vrcp.pop %v861
    %v863 = vmul.f32 1.0, %v862
    %v865 = vrot.slane %v810, 3
    %v867 = vadd.f32 %v612, %v865
    %v868 = vxor.u32 %v867, 2147483648
    %v869 = vmul.f32 %v868, 1.442695
    %v870 = vpow.pop %v869
    %v871 = vadd.f32 %v870, 1.0
    %v872 = vrcp.pop %v871
    %v873 = vmul.f32 1.0, %v872
    %v874 = vlaneseq
    %v875 = vshrl.u32 %v874, 7
    %v876 = vsub.s32 1, %v875
    %v877 = vrot.slane %v253, %v876
    %v878 = vadd.f32 %v849, %v877
    %v880 = vrot.slane %v878, 3
    %v882 = vmul.f32 %v863, %v880
    %v883 = vadd.f32 %v613, %v882
    %v884 = vtanh.pop %v883
    %v885 = vsub.f32 1.0, %v873
    %v886 = vmul.f32 %v885, %v884
    %v887 = vmul.f32 %v873, 0.0
    %v888 = vadd.f32 %v886, %v887
    %v889 = vpack.c.bf16 %v888, %v888
    %v891 = vshrl.u32 %v889, 16
    %v893 = vrot.slane %v891, 2
    %v894 = vshll.u32 %v889, 16
    %v896 = vrot.slane %v894, 3
    %v897 = vor.u32 %v893, %v896
    %v899 = vsel %vm769, %v897, 0
    %901 = vmatprep.subr.bf16.mxu0 0
    %902 = vmatpush1.bf16.msra.mxu0 0
    %903 = vmatprep.subr.bf16.mxu0 0
    %904 = vmatpush1.bf16.msra.mxu0 0
    %905 = vmatprep.subr.bf16.mxu0 0
    %906 = vmatpush1.bf16.msra.mxu0 0
    %907 = vmatprep.subr.bf16.mxu0 0
    %908 = vmatpush1.bf16.msra.mxu0 0
    %909 = vmatprep.subr.bf16.mxu0 %v755
    %910 = vmatpush1.bf16.msra.mxu0 %v754
    %911 = vmatprep.subr.bf16.mxu0 %v752
    %912 = vmatpush1.bf16.msra.mxu0 %v751
    %913 = vmatprep.subr.bf16.mxu0 %v749
    %914 = vmatpush1.bf16.msra.mxu0 %v748
    %915 = vmatprep.subr.bf16.mxu0 %v746
    %916 = vmatpush1.bf16.msra.mxu0 %v745
    %917 = vmatprep.subr.bf16.mxu0 0
    %918 = vmatpush2.bf16.msra.mxu0 0
    %919 = vmatprep.subr.bf16.mxu0 0
    %920 = vmatpush2.bf16.msra.mxu0 0
    %921 = vmatprep.subr.bf16.mxu0 0
    %922 = vmatpush2.bf16.msra.mxu0 0
    %923 = vmatprep.subr.bf16.mxu0 0
    %924 = vmatpush2.bf16.msra.mxu0 0
    %925 = vmatprep.subr.bf16.mxu0 0
    %926 = vmatpush2.bf16.msra.mxu0 0
    %927 = vmatprep.subr.bf16.mxu0 0
    %928 = vmatpush2.bf16.msra.mxu0 0
    %929 = vmatprep.subr.bf16.mxu0 0
    %930 = vmatpush2.bf16.msra.mxu0 0
    %931 = vmatprep.subr.bf16.mxu0 0
    %932 = vmatpush2.bf16.msra.mxu0 0
    %933 = vmatprep.mubr.bf16.mxu0 0
    %934 = vmatmul.mubr.bf16.gmra.mxu0 %v899
    %v935 = vpop.f32.mrf.mxu0
    %v936 = vadd.f32 0.0, %v935
    %v937 = vpop.f32.mrf.mxu0
    %v938 = vadd.f32 0.0, %v937
    %v939 = vpop.f32.mrf.mxu0
    %v940 = vpop.f32.mrf.mxu0
    %941 = vdwg.mxu0
    %942 = vmatprep.subr.bf16.mxu0 0
    %943 = vmatpush1.bf16.msra.mxu0 0
    %944 = vmatprep.subr.bf16.mxu0 0
    %945 = vmatpush1.bf16.msra.mxu0 0
    %946 = vmatprep.subr.bf16.mxu0 0
    %947 = vmatpush1.bf16.msra.mxu0 0
    %948 = vmatprep.subr.bf16.mxu0 0
    %949 = vmatpush1.bf16.msra.mxu0 0
    %950 = vmatprep.subr.bf16.mxu0 0
    %951 = vmatpush1.bf16.msra.mxu0 %v756
    %952 = vmatprep.subr.bf16.mxu0 0
    %953 = vmatpush1.bf16.msra.mxu0 %v753
    %954 = vmatprep.subr.bf16.mxu0 0
    %955 = vmatpush1.bf16.msra.mxu0 %v750
    %956 = vmatprep.subr.bf16.mxu0 0
    %957 = vmatpush1.bf16.msra.mxu0 %v747
    %958 = vmatprep.subr.bf16.mxu0 0
    %959 = vmatpush2.bf16.msra.mxu0 0
    %960 = vmatprep.subr.bf16.mxu0 0
    %961 = vmatpush2.bf16.msra.mxu0 0
    %962 = vmatprep.subr.bf16.mxu0 0
    %963 = vmatpush2.bf16.msra.mxu0 0
    %964 = vmatprep.subr.bf16.mxu0 0
    %965 = vmatpush2.bf16.msra.mxu0 0
    %966 = vmatprep.subr.bf16.mxu0 0
    %967 = vmatpush2.bf16.msra.mxu0 0
    %968 = vmatprep.subr.bf16.mxu0 0
    %969 = vmatpush2.bf16.msra.mxu0 0
    %970 = vmatprep.subr.bf16.mxu0 0
    %971 = vmatpush2.bf16.msra.mxu0 0
    %972 = vmatprep.subr.bf16.mxu0 0
    %973 = vmatpush2.bf16.msra.mxu0 0
    %974 = vmatprep.mubr.bf16.mxu0 0
    %975 = vmatmul.mubr.bf16.gmra.mxu0 %v899
    %v976 = vpop.f32.mrf.mxu0
    %v977 = vadd.f32 0.0, %v976
    %v978 = vpop.f32.mrf.mxu0
    %v979 = vpop.f32.mrf.mxu0
    %v980 = vpop.f32.mrf.mxu0
    %981 = vdwg.mxu0
    %v983 = vrot.slane %v936, 3
    %v985 = vadd.f32 %v632, %v983
    %v986 = vxor.u32 %v985, 2147483648
    %v987 = vmul.f32 %v986, 1.442695
    %v988 = vpow.pop %v987
    %v989 = vadd.f32 %v988, 1.0
    %v990 = vrcp.pop %v989
    %v991 = vmul.f32 1.0, %v990
    %v993 = vrot.slane %v938, 3
    %v995 = vadd.f32 %v633, %v993
    %v996 = vxor.u32 %v995, 2147483648
    %v997 = vmul.f32 %v996, 1.442695
    %v998 = vpow.pop %v997
    %v999 = vadd.f32 %v998, 1.0
    %v1000 = vrcp.pop %v999
    %v1001 = vmul.f32 1.0, %v1000
    %v1002 = vadd.f32 %v977, %v877
    %v1004 = vrot.slane %v1002, 3
    %v1006 = vmul.f32 %v991, %v1004
    %v1007 = vadd.f32 %v634, %v1006
    %v1008 = vtanh.pop %v1007
    %v1009 = vsub.f32 1.0, %v1001
    %v1010 = vmul.f32 %v1009, %v1008
    %v1011 = vmul.f32 %v1001, %v888
    %v1012 = vadd.f32 %v1010, %v1011
    %v1013 = vpack.c.bf16 %v1012, %v1012
    %v1015 = vshrl.u32 %v1013, 16
    %v1017 = vrot.slane %v1015, 2
    %v1018 = vshll.u32 %v1013, 16
    %v1020 = vrot.slane %v1018, 3
    %v1021 = vor.u32 %v1017, %v1020
    %v1023 = vsel %vm769, %v1021, 0
    %1025 = vmatprep.subr.bf16.mxu0 0
    %1026 = vmatpush1.bf16.msra.mxu0 0
    %1027 = vmatprep.subr.bf16.mxu0 0
    %1028 = vmatpush1.bf16.msra.mxu0 0
    %1029 = vmatprep.subr.bf16.mxu0 0
    %1030 = vmatpush1.bf16.msra.mxu0 0
    %1031 = vmatprep.subr.bf16.mxu0 0
    %1032 = vmatpush1.bf16.msra.mxu0 0
    %1033 = vmatprep.subr.bf16.mxu0 %v755
    %1034 = vmatpush1.bf16.msra.mxu0 %v754
    %1035 = vmatprep.subr.bf16.mxu0 %v752
    %1036 = vmatpush1.bf16.msra.mxu0 %v751
    %1037 = vmatprep.subr.bf16.mxu0 %v749
    %1038 = vmatpush1.bf16.msra.mxu0 %v748
    %1039 = vmatprep.subr.bf16.mxu0 %v746
    %1040 = vmatpush1.bf16.msra.mxu0 %v745
    %1041 = vmatprep.subr.bf16.mxu0 0
    %1042 = vmatpush2.bf16.msra.mxu0 0
    %1043 = vmatprep.subr.bf16.mxu0 0
    %1044 = vmatpush2.bf16.msra.mxu0 0
    %1045 = vmatprep.subr.bf16.mxu0 0
    %1046 = vmatpush2.bf16.msra.mxu0 0
    %1047 = vmatprep.subr.bf16.mxu0 0
    %1048 = vmatpush2.bf16.msra.mxu0 0
    %1049 = vmatprep.subr.bf16.mxu0 0
    %1050 = vmatpush2.bf16.msra.mxu0 0
    %1051 = vmatprep.subr.bf16.mxu0 0
    %1052 = vmatpush2.bf16.msra.mxu0 0
    %1053 = vmatprep.subr.bf16.mxu0 0
    %1054 = vmatpush2.bf16.msra.mxu0 0
    %1055 = vmatprep.subr.bf16.mxu0 0
    %1056 = vmatpush2.bf16.msra.mxu0 0
    %1057 = vmatprep.mubr.bf16.mxu0 0
    %1058 = vmatmul.mubr.bf16.gmra.mxu0 %v1023
    %v1059 = vpop.f32.mrf.mxu0
    %v1060 = vadd.f32 0.0, %v1059
    %v1061 = vpop.f32.mrf.mxu0
    %v1062 = vadd.f32 0.0, %v1061
    %v1063 = vpop.f32.mrf.mxu0
    %v1064 = vpop.f32.mrf.mxu0
    %1065 = vdwg.mxu0
    %1066 = vmatprep.subr.bf16.mxu0 0
    %1067 = vmatpush1.bf16.msra.mxu0 0
    %1068 = vmatprep.subr.bf16.mxu0 0
    %1069 = vmatpush1.bf16.msra.mxu0 0
    %1070 = vmatprep.subr.bf16.mxu0 0
    %1071 = vmatpush1.bf16.msra.mxu0 0
    %1072 = vmatprep.subr.bf16.mxu0 0
    %1073 = vmatpush1.bf16.msra.mxu0 0
    %1074 = vmatprep.subr.bf16.mxu0 0
    %1075 = vmatpush1.bf16.msra.mxu0 %v756
    %1076 = vmatprep.subr.bf16.mxu0 0
    %1077 = vmatpush1.bf16.msra.mxu0 %v753
    %1078 = vmatprep.subr.bf16.mxu0 0
    %1079 = vmatpush1.bf16.msra.mxu0 %v750
    %1080 = vmatprep.subr.bf16.mxu0 0
    %1081 = vmatpush1.bf16.msra.mxu0 %v747
    %1082 = vmatprep.subr.bf16.mxu0 0
    %1083 = vmatpush2.bf16.msra.mxu0 0
    %1084 = vmatprep.subr.bf16.mxu0 0
    %1085 = vmatpush2.bf16.msra.mxu0 0
    %1086 = vmatprep.subr.bf16.mxu0 0
    %1087 = vmatpush2.bf16.msra.mxu0 0
    %1088 = vmatprep.subr.bf16.mxu0 0
    %1089 = vmatpush2.bf16.msra.mxu0 0
    %1090 = vmatprep.subr.bf16.mxu0 0
    %1091 = vmatpush2.bf16.msra.mxu0 0
    %1092 = vmatprep.subr.bf16.mxu0 0
    %1093 = vmatpush2.bf16.msra.mxu0 0
    %1094 = vmatprep.subr.bf16.mxu0 0
    %1095 = vmatpush2.bf16.msra.mxu0 0
    %1096 = vmatprep.subr.bf16.mxu0 0
    %1097 = vmatpush2.bf16.msra.mxu0 0
    %1098 = vmatprep.mubr.bf16.mxu0 0
    %1099 = vmatmul.mubr.bf16.gmra.mxu0 %v1023
    %v1100 = vpop.f32.mrf.mxu0
    %v1101 = vadd.f32 0.0, %v1100
    %v1102 = vpop.f32.mrf.mxu0
    %v1103 = vpop.f32.mrf.mxu0
    %v1104 = vpop.f32.mrf.mxu0
    %1105 = vdwg.mxu0
    %v1107 = vrot.slane %v1060, 3
    %v1109 = vadd.f32 %v653, %v1107
    %v1110 = vxor.u32 %v1109, 2147483648
    %v1111 = vmul.f32 %v1110, 1.442695
    %v1112 = vpow.pop %v1111
    %v1113 = vadd.f32 %v1112, 1.0
    %v1114 = vrcp.pop %v1113
    %v1115 = vmul.f32 1.0, %v1114
    %v1117 = vrot.slane %v1062, 3
    %v1119 = vadd.f32 %v654, %v1117
    %v1120 = vxor.u32 %v1119, 2147483648
    %v1121 = vmul.f32 %v1120, 1.442695
    %v1122 = vpow.pop %v1121
    %v1123 = vadd.f32 %v1122, 1.0
    %v1124 = vrcp.pop %v1123
    %v1125 = vmul.f32 1.0, %v1124
    %v1126 = vadd.f32 %v1101, %v877
    %v1128 = vrot.slane %v1126, 3
    %v1130 = vmul.f32 %v1115, %v1128
    %v1131 = vadd.f32 %v655, %v1130
    %v1132 = vtanh.pop %v1131
    %v1133 = vsub.f32 1.0, %v1125
    %v1134 = vmul.f32 %v1133, %v1132
    %v1135 = vmul.f32 %v1125, %v1012
    %v1136 = vadd.f32 %v1134, %v1135
    %v1137 = vpack.c.bf16 %v1136, %v1136
    %v1139 = vshrl.u32 %v1137, 16
    %v1141 = vrot.slane %v1139, 2
    %v1142 = vshll.u32 %v1137, 16
    %v1144 = vrot.slane %v1142, 3
    %v1145 = vor.u32 %v1141, %v1144
    %v1147 = vsel %vm769, %v1145, 0
    %1149 = vmatprep.subr.bf16.mxu0 0
    %1150 = vmatpush1.bf16.msra.mxu0 0
    %1151 = vmatprep.subr.bf16.mxu0 0
    %1152 = vmatpush1.bf16.msra.mxu0 0
    %1153 = vmatprep.subr.bf16.mxu0 0
    %1154 = vmatpush1.bf16.msra.mxu0 0
    %1155 = vmatprep.subr.bf16.mxu0 0
    %1156 = vmatpush1.bf16.msra.mxu0 0
    %1157 = vmatprep.subr.bf16.mxu0 %v755
    %1158 = vmatpush1.bf16.msra.mxu0 %v754
    %1159 = vmatprep.subr.bf16.mxu0 %v752
    %1160 = vmatpush1.bf16.msra.mxu0 %v751
    %1161 = vmatprep.subr.bf16.mxu0 %v749
    %1162 = vmatpush1.bf16.msra.mxu0 %v748
    %1163 = vmatprep.subr.bf16.mxu0 %v746
    %1164 = vmatpush1.bf16.msra.mxu0 %v745
    %1165 = vmatprep.subr.bf16.mxu0 0
    %1166 = vmatpush2.bf16.msra.mxu0 0
    %1167 = vmatprep.subr.bf16.mxu0 0
    %1168 = vmatpush2.bf16.msra.mxu0 0
    %1169 = vmatprep.subr.bf16.mxu0 0
    %1170 = vmatpush2.bf16.msra.mxu0 0
    %1171 = vmatprep.subr.bf16.mxu0 0
    %1172 = vmatpush2.bf16.msra.mxu0 0
    %1173 = vmatprep.subr.bf16.mxu0 0
    %1174 = vmatpush2.bf16.msra.mxu0 0
    %1175 = vmatprep.subr.bf16.mxu0 0
    %1176 = vmatpush2.bf16.msra.mxu0 0
    %1177 = vmatprep.subr.bf16.mxu0 0
    %1178 = vmatpush2.bf16.msra.mxu0 0
    %1179 = vmatprep.subr.bf16.mxu0 0
    %1180 = vmatpush2.bf16.msra.mxu0 0
    %1181 = vmatprep.mubr.bf16.mxu0 0
    %1182 = vmatmul.mubr.bf16.gmra.mxu0 %v1147
    %v1183 = vpop.f32.mrf.mxu0
    %v1184 = vadd.f32 0.0, %v1183
    %v1185 = vpop.f32.mrf.mxu0
    %v1186 = vadd.f32 0.0, %v1185
    %v1187 = vpop.f32.mrf.mxu0
    %v1188 = vpop.f32.mrf.mxu0
    %1189 = vdwg.mxu0
    %1190 = vmatprep.subr.bf16.mxu0 0
    %1191 = vmatpush1.bf16.msra.mxu0 0
    %1192 = vmatprep.subr.bf16.mxu0 0
    %1193 = vmatpush1.bf16.msra.mxu0 0
    %1194 = vmatprep.subr.bf16.mxu0 0
    %1195 = vmatpush1.bf16.msra.mxu0 0
    %1196 = vmatprep.subr.bf16.mxu0 0
    %1197 = vmatpush1.bf16.msra.mxu0 0
    %1198 = vmatprep.subr.bf16.mxu0 0
    %1199 = vmatpush1.bf16.msra.mxu0 %v756
    %1200 = vmatprep.subr.bf16.mxu0 0
    %1201 = vmatpush1.bf16.msra.mxu0 %v753
    %1202 = vmatprep.subr.bf16.mxu0 0
    %1203 = vmatpush1.bf16.msra.mxu0 %v750
    %1204 = vmatprep.subr.bf16.mxu0 0
    %1205 = vmatpush1.bf16.msra.mxu0 %v747
    %1206 = vmatprep.subr.bf16.mxu0 0
    %1207 = vmatpush2.bf16.msra.mxu0 0
    %1208 = vmatprep.subr.bf16.mxu0 0
    %1209 = vmatpush2.bf16.msra.mxu0 0
    %1210 = vmatprep.subr.bf16.mxu0 0
    %1211 = vmatpush2.bf16.msra.mxu0 0
    %1212 = vmatprep.subr.bf16.mxu0 0
    %1213 = vmatpush2.bf16.msra.mxu0 0
    %1214 = vmatprep.subr.bf16.mxu0 0
    %1215 = vmatpush2.bf16.msra.mxu0 0
    %1216 = vmatprep.subr.bf16.mxu0 0
    %1217 = vmatpush2.bf16.msra.mxu0 0
    %1218 = vmatprep.subr.bf16.mxu0 0
    %1219 = vmatpush2.bf16.msra.mxu0 0
    %1220 = vmatprep.subr.bf16.mxu0 0
    %1221 = vmatpush2.bf16.msra.mxu0 0
    %1222 = vmatprep.mubr.bf16.mxu0 0
    %1223 = vmatmul.mubr.bf16.gmra.mxu0 %v1147
    %v1224 = vpop.f32.mrf.mxu0
    %v1225 = vadd.f32 0.0, %v1224
    %v1226 = vpop.f32.mrf.mxu0
    %v1227 = vpop.f32.mrf.mxu0
    %v1228 = vpop.f32.mrf.mxu0
    %1229 = vdwg.mxu0
    %v1231 = vrot.slane %v1184, 3
    %v1233 = vadd.f32 %v674, %v1231
    %v1234 = vxor.u32 %v1233, 2147483648
    %v1235 = vmul.f32 %v1234, 1.442695
    %v1236 = vpow.pop %v1235
    %v1237 = vadd.f32 %v1236, 1.0
    %v1238 = vrcp.pop %v1237
    %v1239 = vmul.f32 1.0, %v1238
    %v1241 = vrot.slane %v1186, 3
    %v1243 = vadd.f32 %v675, %v1241
    %v1244 = vxor.u32 %v1243, 2147483648
    %v1245 = vmul.f32 %v1244, 1.442695
    %v1246 = vpow.pop %v1245
    %v1247 = vadd.f32 %v1246, 1.0
    %v1248 = vrcp.pop %v1247
    %v1249 = vmul.f32 1.0, %v1248
    %v1250 = vadd.f32 %v1225, %v877
    %v1252 = vrot.slane %v1250, 3
    %v1254 = vmul.f32 %v1239, %v1252
    %v1255 = vadd.f32 %v676, %v1254
    %v1256 = vtanh.pop %v1255
    %v1257 = vsub.f32 1.0, %v1249
    %v1258 = vmul.f32 %v1257, %v1256
    %v1259 = vmul.f32 %v1249, %v1136
    %v1260 = vadd.f32 %v1258, %v1259
    %v1261 = vpack.c.bf16 %v1260, %v1260
    %v1263 = vshrl.u32 %v1261, 16
    %v1265 = vrot.slane %v1263, 2
    %v1266 = vshll.u32 %v1261, 16
    %v1268 = vrot.slane %v1266, 3
    %v1269 = vor.u32 %v1265, %v1268
    %v1271 = vsel %vm769, %v1269, 0
    %1273 = vmatprep.subr.bf16.mxu0 0
    %1274 = vmatpush1.bf16.msra.mxu0 0
    %1275 = vmatprep.subr.bf16.mxu0 0
    %1276 = vmatpush1.bf16.msra.mxu0 0
    %1277 = vmatprep.subr.bf16.mxu0 0
    %1278 = vmatpush1.bf16.msra.mxu0 0
    %1279 = vmatprep.subr.bf16.mxu0 0
    %1280 = vmatpush1.bf16.msra.mxu0 0
    %1281 = vmatprep.subr.bf16.mxu0 %v755
    %1282 = vmatpush1.bf16.msra.mxu0 %v754
    %1283 = vmatprep.subr.bf16.mxu0 %v752
    %1284 = vmatpush1.bf16.msra.mxu0 %v751
    %1285 = vmatprep.subr.bf16.mxu0 %v749
    %1286 = vmatpush1.bf16.msra.mxu0 %v748
    %1287 = vmatprep.subr.bf16.mxu0 %v746
    %1288 = vmatpush1.bf16.msra.mxu0 %v745
    %1289 = vmatprep.subr.bf16.mxu0 0
    %1290 = vmatpush2.bf16.msra.mxu0 0
    %1291 = vmatprep.subr.bf16.mxu0 0
    %1292 = vmatpush2.bf16.msra.mxu0 0
    %1293 = vmatprep.subr.bf16.mxu0 0
    %1294 = vmatpush2.bf16.msra.mxu0 0
    %1295 = vmatprep.subr.bf16.mxu0 0
    %1296 = vmatpush2.bf16.msra.mxu0 0
    %1297 = vmatprep.subr.bf16.mxu0 0
    %1298 = vmatpush2.bf16.msra.mxu0 0
    %1299 = vmatprep.subr.bf16.mxu0 0
    %1300 = vmatpush2.bf16.msra.mxu0 0
    %1301 = vmatprep.subr.bf16.mxu0 0
    %1302 = vmatpush2.bf16.msra.mxu0 0
    %1303 = vmatprep.subr.bf16.mxu0 0
    %1304 = vmatpush2.bf16.msra.mxu0 0
    %1305 = vmatprep.mubr.bf16.mxu0 0
    %1306 = vmatmul.mubr.bf16.gmra.mxu0 %v1271
    %v1307 = vpop.f32.mrf.mxu0
    %v1308 = vadd.f32 0.0, %v1307
    %v1309 = vpop.f32.mrf.mxu0
    %v1310 = vadd.f32 0.0, %v1309
    %v1311 = vpop.f32.mrf.mxu0
    %v1312 = vpop.f32.mrf.mxu0
    %1313 = vdwg.mxu0
    %1314 = vmatprep.subr.bf16.mxu0 0
    %1315 = vmatpush1.bf16.msra.mxu0 0
    %1316 = vmatprep.subr.bf16.mxu0 0
    %1317 = vmatpush1.bf16.msra.mxu0 0
    %1318 = vmatprep.subr.bf16.mxu0 0
    %1319 = vmatpush1.bf16.msra.mxu0 0
    %1320 = vmatprep.subr.bf16.mxu0 0
    %1321 = vmatpush1.bf16.msra.mxu0 0
    %1322 = vmatprep.subr.bf16.mxu0 0
    %1323 = vmatpush1.bf16.msra.mxu0 %v756
    %1324 = vmatprep.subr.bf16.mxu0 0
    %1325 = vmatpush1.bf16.msra.mxu0 %v753
    %1326 = vmatprep.subr.bf16.mxu0 0
    %1327 = vmatpush1.bf16.msra.mxu0 %v750
    %1328 = vmatprep.subr.bf16.mxu0 0
    %1329 = vmatpush1.bf16.msra.mxu0 %v747
    %1330 = vmatprep.subr.bf16.mxu0 0
    %1331 = vmatpush2.bf16.msra.mxu0 0
    %1332 = vmatprep.subr.bf16.mxu0 0
    %1333 = vmatpush2.bf16.msra.mxu0 0
    %1334 = vmatprep.subr.bf16.mxu0 0
    %1335 = vmatpush2.bf16.msra.mxu0 0
    %1336 = vmatprep.subr.bf16.mxu0 0
    %1337 = vmatpush2.bf16.msra.mxu0 0
    %1338 = vmatprep.subr.bf16.mxu0 0
    %1339 = vmatpush2.bf16.msra.mxu0 0
    %1340 = vmatprep.subr.bf16.mxu0 0
    %1341 = vmatpush2.bf16.msra.mxu0 0
    %1342 = vmatprep.subr.bf16.mxu0 0
    %1343 = vmatpush2.bf16.msra.mxu0 0
    %1344 = vmatprep.subr.bf16.mxu0 0
    %1345 = vmatpush2.bf16.msra.mxu0 0
    %1346 = vmatprep.mubr.bf16.mxu0 0
    %1347 = vmatmul.mubr.bf16.gmra.mxu0 %v1271
    %v1348 = vpop.f32.mrf.mxu0
    %v1349 = vadd.f32 0.0, %v1348
    %v1350 = vpop.f32.mrf.mxu0
    %v1351 = vpop.f32.mrf.mxu0
    %v1352 = vpop.f32.mrf.mxu0
    %1353 = vdwg.mxu0
    %v1355 = vrot.slane %v1308, 3
    %v1357 = vadd.f32 %v677, %v1355
    %v1358 = vxor.u32 %v1357, 2147483648
    %v1359 = vmul.f32 %v1358, 1.442695
    %v1360 = vpow.pop %v1359
    %v1361 = vadd.f32 %v1360, 1.0
    %v1362 = vrcp.pop %v1361
    %v1363 = vmul.f32 1.0, %v1362
    %v1365 = vrot.slane %v1310, 3
    %v1367 = vadd.f32 %v678, %v1365
    %v1368 = vxor.u32 %v1367, 2147483648
    %v1369 = vmul.f32 %v1368, 1.442695
    %v1370 = vpow.pop %v1369
    %v1371 = vadd.f32 %v1370, 1.0
    %v1372 = vrcp.pop %v1371
    %v1373 = vmul.f32 1.0, %v1372
    %v1374 = vadd.f32 %v1349, %v877
    %v1376 = vrot.slane %v1374, 3
    %v1378 = vmul.f32 %v1363, %v1376
    %v1379 = vadd.f32 %v679, %v1378
    %v1380 = vtanh.pop %v1379
    %v1381 = vsub.f32 1.0, %v1373
    %v1382 = vmul.f32 %v1381, %v1380
    %v1383 = vmul.f32 %v1373, %v1260
    %v1384 = vadd.f32 %v1382, %v1383
    %v1385 = vpack.c.bf16 %v1384, %v1384
    %v1387 = vshrl.u32 %v1385, 16
    %v1389 = vrot.slane %v1387, 2
    %v1390 = vshll.u32 %v1385, 16
    %v1392 = vrot.slane %v1390, 3
    %v1393 = vor.u32 %v1389, %v1392
    %v1395 = vsel %vm769, %v1393, 0
    %1397 = vmatprep.subr.bf16.mxu0 0
    %1398 = vmatpush1.bf16.msra.mxu0 0
    %1399 = vmatprep.subr.bf16.mxu0 0
    %1400 = vmatpush1.bf16.msra.mxu0 0
    %1401 = vmatprep.subr.bf16.mxu0 0
    %1402 = vmatpush1.bf16.msra.mxu0 0
    %1403 = vmatprep.subr.bf16.mxu0 0
    %1404 = vmatpush1.bf16.msra.mxu0 0
    %1405 = vmatprep.subr.bf16.mxu0 %v755
    %1406 = vmatpush1.bf16.msra.mxu0 %v754
    %1407 = vmatprep.subr.bf16.mxu0 %v752
    %1408 = vmatpush1.bf16.msra.mxu0 %v751
    %1409 = vmatprep.subr.bf16.mxu0 %v749
    %1410 = vmatpush1.bf16.msra.mxu0 %v748
    %1411 = vmatprep.subr.bf16.mxu0 %v746
    %1412 = vmatpush1.bf16.msra.mxu0 %v745
    %1413 = vmatprep.subr.bf16.mxu0 0
    %1414 = vmatpush2.bf16.msra.mxu0 0
    %1415 = vmatprep.subr.bf16.mxu0 0
    %1416 = vmatpush2.bf16.msra.mxu0 0
    %1417 = vmatprep.subr.bf16.mxu0 0
    %1418 = vmatpush2.bf16.msra.mxu0 0
    %1419 = vmatprep.subr.bf16.mxu0 0
    %1420 = vmatpush2.bf16.msra.mxu0 0
    %1421 = vmatprep.subr.bf16.mxu0 0
    %1422 = vmatpush2.bf16.msra.mxu0 0
    %1423 = vmatprep.subr.bf16.mxu0 0
    %1424 = vmatpush2.bf16.msra.mxu0 0
    %1425 = vmatprep.subr.bf16.mxu0 0
    %1426 = vmatpush2.bf16.msra.mxu0 0
    %1427 = vmatprep.subr.bf16.mxu0 0
    %1428 = vmatpush2.bf16.msra.mxu0 0
    %1429 = vmatprep.mubr.bf16.mxu0 0
    %1430 = vmatmul.mubr.bf16.gmra.mxu0 %v1395
    %v1431 = vpop.f32.mrf.mxu0
    %v1432 = vadd.f32 0.0, %v1431
    %v1433 = vpop.f32.mrf.mxu0
    %v1434 = vadd.f32 0.0, %v1433
    %v1435 = vpop.f32.mrf.mxu0
    %v1436 = vpop.f32.mrf.mxu0
    %1437 = vdwg.mxu0
    %1438 = vmatprep.subr.bf16.mxu0 0
    %1439 = vmatpush1.bf16.msra.mxu0 0
    %1440 = vmatprep.subr.bf16.mxu0 0
    %1441 = vmatpush1.bf16.msra.mxu0 0
    %1442 = vmatprep.subr.bf16.mxu0 0
    %1443 = vmatpush1.bf16.msra.mxu0 0
    %1444 = vmatprep.subr.bf16.mxu0 0
    %1445 = vmatpush1.bf16.msra.mxu0 0
    %1446 = vmatprep.subr.bf16.mxu0 0
    %1447 = vmatpush1.bf16.msra.mxu0 %v756
    %1448 = vmatprep.subr.bf16.mxu0 0
    %1449 = vmatpush1.bf16.msra.mxu0 %v753
    %1450 = vmatprep.subr.bf16.mxu0 0
    %1451 = vmatpush1.bf16.msra.mxu0 %v750
    %1452 = vmatprep.subr.bf16.mxu0 0
    %1453 = vmatpush1.bf16.msra.mxu0 %v747
    %1454 = vmatprep.subr.bf16.mxu0 0
    %1455 = vmatpush2.bf16.msra.mxu0 0
    %1456 = vmatprep.subr.bf16.mxu0 0
    %1457 = vmatpush2.bf16.msra.mxu0 0
    %1458 = vmatprep.subr.bf16.mxu0 0
    %1459 = vmatpush2.bf16.msra.mxu0 0
    %1460 = vmatprep.subr.bf16.mxu0 0
    %1461 = vmatpush2.bf16.msra.mxu0 0
    %1462 = vmatprep.subr.bf16.mxu0 0
    %1463 = vmatpush2.bf16.msra.mxu0 0
    %1464 = vmatprep.subr.bf16.mxu0 0
    %1465 = vmatpush2.bf16.msra.mxu0 0
    %1466 = vmatprep.subr.bf16.mxu0 0
    %1467 = vmatpush2.bf16.msra.mxu0 0
    %1468 = vmatprep.subr.bf16.mxu0 0
    %1469 = vmatpush2.bf16.msra.mxu0 0
    %1470 = vmatprep.mubr.bf16.mxu0 0
    %1471 = vmatmul.mubr.bf16.gmra.mxu0 %v1395
    %v1472 = vpop.f32.mrf.mxu0
    %v1473 = vadd.f32 0.0, %v1472
    %v1474 = vpop.f32.mrf.mxu0
    %v1475 = vpop.f32.mrf.mxu0
    %v1476 = vpop.f32.mrf.mxu0
    %1477 = vdwg.mxu0
    %v1479 = vrot.slane %v1432, 3
    %v1481 = vadd.f32 %v680, %v1479
    %v1482 = vxor.u32 %v1481, 2147483648
    %v1483 = vmul.f32 %v1482, 1.442695
    %v1484 = vpow.pop %v1483
    %v1485 = vadd.f32 %v1484, 1.0
    %v1486 = vrcp.pop %v1485
    %v1487 = vmul.f32 1.0, %v1486
    %v1489 = vrot.slane %v1434, 3
    %v1491 = vadd.f32 %v681, %v1489
    %v1492 = vxor.u32 %v1491, 2147483648
    %v1493 = vmul.f32 %v1492, 1.442695
    %v1494 = vpow.pop %v1493
    %v1495 = vadd.f32 %v1494, 1.0
    %v1496 = vrcp.pop %v1495
    %v1497 = vmul.f32 1.0, %v1496
    %v1498 = vadd.f32 %v1473, %v877
    %v1500 = vrot.slane %v1498, 3
    %v1502 = vmul.f32 %v1487, %v1500
    %v1503 = vadd.f32 %v682, %v1502
    %v1504 = vtanh.pop %v1503
    %v1505 = vsub.f32 1.0, %v1497
    %v1506 = vmul.f32 %v1505, %v1504
    %v1507 = vmul.f32 %v1497, %v1384
    %v1508 = vadd.f32 %v1506, %v1507
    %v1509 = vpack.c.bf16 %v1508, %v1508
    %v1511 = vshrl.u32 %v1509, 16
    %v1513 = vrot.slane %v1511, 2
    %v1514 = vshll.u32 %v1509, 16
    %v1516 = vrot.slane %v1514, 3
    %v1517 = vor.u32 %v1513, %v1516
    %v1519 = vsel %vm769, %v1517, 0
    %1521 = vmatprep.subr.bf16.mxu0 0
    %1522 = vmatpush1.bf16.msra.mxu0 0
    %1523 = vmatprep.subr.bf16.mxu0 0
    %1524 = vmatpush1.bf16.msra.mxu0 0
    %1525 = vmatprep.subr.bf16.mxu0 0
    %1526 = vmatpush1.bf16.msra.mxu0 0
    %1527 = vmatprep.subr.bf16.mxu0 0
    %1528 = vmatpush1.bf16.msra.mxu0 0
    %1529 = vmatprep.subr.bf16.mxu0 %v755
    %1530 = vmatpush1.bf16.msra.mxu0 %v754
    %1531 = vmatprep.subr.bf16.mxu0 %v752
    %1532 = vmatpush1.bf16.msra.mxu0 %v751
    %1533 = vmatprep.subr.bf16.mxu0 %v749
    %1534 = vmatpush1.bf16.msra.mxu0 %v748
    %1535 = vmatprep.subr.bf16.mxu0 %v746
    %1536 = vmatpush1.bf16.msra.mxu0 %v745
    %1537 = vmatprep.subr.bf16.mxu0 0
    %1538 = vmatpush2.bf16.msra.mxu0 0
    %1539 = vmatprep.subr.bf16.mxu0 0
    %1540 = vmatpush2.bf16.msra.mxu0 0
    %1541 = vmatprep.subr.bf16.mxu0 0
    %1542 = vmatpush2.bf16.msra.mxu0 0
    %1543 = vmatprep.subr.bf16.mxu0 0
    %1544 = vmatpush2.bf16.msra.mxu0 0
    %1545 = vmatprep.subr.bf16.mxu0 0
    %1546 = vmatpush2.bf16.msra.mxu0 0
    %1547 = vmatprep.subr.bf16.mxu0 0
    %1548 = vmatpush2.bf16.msra.mxu0 0
    %1549 = vmatprep.subr.bf16.mxu0 0
    %1550 = vmatpush2.bf16.msra.mxu0 0
    %1551 = vmatprep.subr.bf16.mxu0 0
    %1552 = vmatpush2.bf16.msra.mxu0 0
    %1553 = vmatprep.mubr.bf16.mxu0 0
    %1554 = vmatmul.mubr.bf16.gmra.mxu0 %v1519
    %v1555 = vpop.f32.mrf.mxu0
    %v1556 = vadd.f32 0.0, %v1555
    %v1557 = vpop.f32.mrf.mxu0
    %v1558 = vadd.f32 0.0, %v1557
    %v1559 = vpop.f32.mrf.mxu0
    %v1560 = vpop.f32.mrf.mxu0
    %1561 = vdwg.mxu0
    %1562 = vmatprep.subr.bf16.mxu0 0
    %1563 = vmatpush1.bf16.msra.mxu0 0
    %1564 = vmatprep.subr.bf16.mxu0 0
    %1565 = vmatpush1.bf16.msra.mxu0 0
    %1566 = vmatprep.subr.bf16.mxu0 0
    %1567 = vmatpush1.bf16.msra.mxu0 0
    %1568 = vmatprep.subr.bf16.mxu0 0
    %1569 = vmatpush1.bf16.msra.mxu0 0
    %1570 = vmatprep.subr.bf16.mxu0 0
    %1571 = vmatpush1.bf16.msra.mxu0 %v756
    %1572 = vmatprep.subr.bf16.mxu0 0
    %1573 = vmatpush1.bf16.msra.mxu0 %v753
    %1574 = vmatprep.subr.bf16.mxu0 0
    %1575 = vmatpush1.bf16.msra.mxu0 %v750
    %1576 = vmatprep.subr.bf16.mxu0 0
    %1577 = vmatpush1.bf16.msra.mxu0 %v747
    %1578 = vmatprep.subr.bf16.mxu0 0
    %1579 = vmatpush2.bf16.msra.mxu0 0
    %1580 = vmatprep.subr.bf16.mxu0 0
    %1581 = vmatpush2.bf16.msra.mxu0 0
    %1582 = vmatprep.subr.bf16.mxu0 0
    %1583 = vmatpush2.bf16.msra.mxu0 0
    %1584 = vmatprep.subr.bf16.mxu0 0
    %1585 = vmatpush2.bf16.msra.mxu0 0
    %1586 = vmatprep.subr.bf16.mxu0 0
    %1587 = vmatpush2.bf16.msra.mxu0 0
    %1588 = vmatprep.subr.bf16.mxu0 0
    %1589 = vmatpush2.bf16.msra.mxu0 0
    %1590 = vmatprep.subr.bf16.mxu0 0
    %1591 = vmatpush2.bf16.msra.mxu0 0
    %1592 = vmatprep.subr.bf16.mxu0 0
    %1593 = vmatpush2.bf16.msra.mxu0 0
    %1594 = vmatprep.mubr.bf16.mxu0 0
    %1595 = vmatmul.mubr.bf16.gmra.mxu0 %v1519
    %v1596 = vpop.f32.mrf.mxu0
    %v1597 = vadd.f32 0.0, %v1596
    %v1598 = vpop.f32.mrf.mxu0
    %v1599 = vpop.f32.mrf.mxu0
    %v1600 = vpop.f32.mrf.mxu0
    %1601 = vdwg.mxu0
    %v1603 = vrot.slane %v1556, 3
    %v1605 = vadd.f32 %v683, %v1603
    %v1606 = vxor.u32 %v1605, 2147483648
    %v1607 = vmul.f32 %v1606, 1.442695
    %v1608 = vpow.pop %v1607
    %v1609 = vadd.f32 %v1608, 1.0
    %v1610 = vrcp.pop %v1609
    %v1611 = vmul.f32 1.0, %v1610
    %v1613 = vrot.slane %v1558, 3
    %v1615 = vadd.f32 %v684, %v1613
    %v1616 = vxor.u32 %v1615, 2147483648
    %v1617 = vmul.f32 %v1616, 1.442695
    %v1618 = vpow.pop %v1617
    %v1619 = vadd.f32 %v1618, 1.0
    %v1620 = vrcp.pop %v1619
    %v1621 = vmul.f32 1.0, %v1620
    %v1622 = vadd.f32 %v1597, %v877
    %v1624 = vrot.slane %v1622, 3
    %v1626 = vmul.f32 %v1611, %v1624
    %v1627 = vadd.f32 %v685, %v1626
    %v1628 = vtanh.pop %v1627
    %v1629 = vsub.f32 1.0, %v1621
    %v1630 = vmul.f32 %v1629, %v1628
    %v1631 = vmul.f32 %v1621, %v1508
    %v1632 = vadd.f32 %v1630, %v1631
    %v1633 = vpack.c.bf16 %v1632, %v1632
    %v1635 = vshrl.u32 %v1633, 16
    %v1637 = vrot.slane %v1635, 2
    %v1638 = vshll.u32 %v1633, 16
    %v1640 = vrot.slane %v1638, 3
    %v1641 = vor.u32 %v1637, %v1640
    %v1643 = vsel %vm769, %v1641, 0
    %1645 = vmatprep.subr.bf16.mxu0 0
    %1646 = vmatpush1.bf16.msra.mxu0 0
    %1647 = vmatprep.subr.bf16.mxu0 0
    %1648 = vmatpush1.bf16.msra.mxu0 0
    %1649 = vmatprep.subr.bf16.mxu0 0
    %1650 = vmatpush1.bf16.msra.mxu0 0
    %1651 = vmatprep.subr.bf16.mxu0 0
    %1652 = vmatpush1.bf16.msra.mxu0 0
    %1653 = vmatprep.subr.bf16.mxu0 %v755
    %1654 = vmatpush1.bf16.msra.mxu0 %v754
    %1655 = vmatprep.subr.bf16.mxu0 %v752
    %1656 = vmatpush1.bf16.msra.mxu0 %v751
    %1657 = vmatprep.subr.bf16.mxu0 %v749
    %1658 = vmatpush1.bf16.msra.mxu0 %v748
    %1659 = vmatprep.subr.bf16.mxu0 %v746
    %1660 = vmatpush1.bf16.msra.mxu0 %v745
    %1661 = vmatprep.subr.bf16.mxu0 0
    %1662 = vmatpush2.bf16.msra.mxu0 0
    %1663 = vmatprep.subr.bf16.mxu0 0
    %1664 = vmatpush2.bf16.msra.mxu0 0
    %1665 = vmatprep.subr.bf16.mxu0 0
    %1666 = vmatpush2.bf16.msra.mxu0 0
    %1667 = vmatprep.subr.bf16.mxu0 0
    %1668 = vmatpush2.bf16.msra.mxu0 0
    %1669 = vmatprep.subr.bf16.mxu0 0
    %1670 = vmatpush2.bf16.msra.mxu0 0
    %1671 = vmatprep.subr.bf16.mxu0 0
    %1672 = vmatpush2.bf16.msra.mxu0 0
    %1673 = vmatprep.subr.bf16.mxu0 0
    %1674 = vmatpush2.bf16.msra.mxu0 0
    %1675 = vmatprep.subr.bf16.mxu0 0
    %1676 = vmatpush2.bf16.msra.mxu0 0
    %1677 = vmatprep.mubr.bf16.mxu0 0
    %1678 = vmatmul.mubr.bf16.gmra.mxu0 %v1643
    %v1679 = vpop.f32.mrf.mxu0
    %v1680 = vadd.f32 0.0, %v1679
    %v1681 = vpop.f32.mrf.mxu0
    %v1682 = vadd.f32 0.0, %v1681
    %v1683 = vpop.f32.mrf.mxu0
    %v1684 = vpop.f32.mrf.mxu0
    %1685 = vdwg.mxu0
    %1686 = vmatprep.subr.bf16.mxu0 0
    %1687 = vmatpush1.bf16.msra.mxu0 0
    %1688 = vmatprep.subr.bf16.mxu0 0
    %1689 = vmatpush1.bf16.msra.mxu0 0
    %1690 = vmatprep.subr.bf16.mxu0 0
    %1691 = vmatpush1.bf16.msra.mxu0 0
    %1692 = vmatprep.subr.bf16.mxu0 0
    %1693 = vmatpush1.bf16.msra.mxu0 0
    %1694 = vmatprep.subr.bf16.mxu0 0
    %1695 = vmatpush1.bf16.msra.mxu0 %v756
    %1696 = vmatprep.subr.bf16.mxu0 0
    %1697 = vmatpush1.bf16.msra.mxu0 %v753
    %1698 = vmatprep.subr.bf16.mxu0 0
    %1699 = vmatpush1.bf16.msra.mxu0 %v750
    %1700 = vmatprep.subr.bf16.mxu0 0
    %1701 = vmatpush1.bf16.msra.mxu0 %v747
    %1702 = vmatprep.subr.bf16.mxu0 0
    %1703 = vmatpush2.bf16.msra.mxu0 0
    %1704 = vmatprep.subr.bf16.mxu0 0
    %1705 = vmatpush2.bf16.msra.mxu0 0
    %1706 = vmatprep.subr.bf16.mxu0 0
    %1707 = vmatpush2.bf16.msra.mxu0 0
    %1708 = vmatprep.subr.bf16.mxu0 0
    %1709 = vmatpush2.bf16.msra.mxu0 0
    %1710 = vmatprep.subr.bf16.mxu0 0
    %1711 = vmatpush2.bf16.msra.mxu0 0
    %1712 = vmatprep.subr.bf16.mxu0 0
    %1713 = vmatpush2.bf16.msra.mxu0 0
    %1714 = vmatprep.subr.bf16.mxu0 0
    %1715 = vmatpush2.bf16.msra.mxu0 0
    %1716 = vmatprep.subr.bf16.mxu0 0
    %1717 = vmatpush2.bf16.msra.mxu0 0
    %1718 = vmatprep.mubr.bf16.mxu0 0
    %1719 = vmatmul.mubr.bf16.gmra.mxu0 %v1643
    %v1720 = vpop.f32.mrf.mxu0
    %v1721 = vadd.f32 0.0, %v1720
    %v1722 = vpop.f32.mrf.mxu0
    %v1723 = vpop.f32.mrf.mxu0
    %v1724 = vpop.f32.mrf.mxu0
    %1725 = vdwg.mxu0
    %v1727 = vrot.slane %v1680, 3
    %v1729 = vadd.f32 %v686, %v1727
    %v1730 = vxor.u32 %v1729, 2147483648
    %v1731 = vmul.f32 %v1730, 1.442695
    %v1732 = vpow.pop %v1731
    %v1733 = vadd.f32 %v1732, 1.0
    %v1734 = vrcp.pop %v1733
    %v1735 = vmul.f32 1.0, %v1734
    %v1737 = vrot.slane %v1682, 3
    %v1739 = vadd.f32 %v687, %v1737
    %v1740 = vxor.u32 %v1739, 2147483648
    %v1741 = vmul.f32 %v1740, 1.442695
    %v1742 = vpow.pop %v1741
    %v1743 = vadd.f32 %v1742, 1.0
    %v1744 = vrcp.pop %v1743
    %v1745 = vmul.f32 1.0, %v1744
    %v1746 = vadd.f32 %v1721, %v877
    %v1748 = vrot.slane %v1746, 3
    %v1750 = vmul.f32 %v1735, %v1748
    %v1751 = vadd.f32 %v688, %v1750
    %v1752 = vtanh.pop %v1751
    %v1753 = vsub.f32 1.0, %v1745
    %v1754 = vmul.f32 %v1753, %v1752
    %v1755 = vmul.f32 %v1745, %v1632
    %v1756 = vadd.f32 %v1754, %v1755
    %v1757 = vlaneseq
    %v1758 = vshrl.u32 %v1757, 7
    %v1759 = vsub.s32 3, %v1758
    %v1760 = vrot.slane %v253, %v1759
    %v1761 = vmul.f32 %v1756, %v1760
    %vm1762 = vcmask 522245
    %v1763 = vsel %vm1762, %v1761, 0.0
    %1764 = vadd.xlane.f32.xlu0 %v1763
    %v1765 = vpop.xlane.xlu0 %1764
    %v1766 = vlaneseq
    %v1767 = vshrl.u32 %v1766, 7
    %v1768 = vsub.s32 4, %v1767
    %v1769 = vrot.slane %v253, %v1768
    %v1770 = vmul.f32 %v1756, %v1769
    %v1771 = vsel %vm1762, %v1770, 0.0
    %1772 = vadd.xlane.f32.xlu0 %v1771
    %v1773 = vpop.xlane.xlu0 %1772
    %vm1774 = vcmask 7168
    %v1775 = vsel %vm1774, %v1765, %v1773
    %v1776 = vlaneseq
    %v1777 = vshrl.u32 %v1776, 7
    %v1778 = vsub.s32 2, %v1777
    %v1779 = vrot.slane %v253, %v1778
    %v1780 = vadd.f32 %v1775, %v1779
    %vm1781 = vcmask 14341
    %v1782 = vsel %vm1781, %v1780, -inf
    %1783 = vmax.xlane.f32.xlu0 %v1782
    %v1784 = vpop.xlane.xlu0 %1783
    %v1785 = vsub.f32 %v1780, %v1784
    %v1786 = vmul.f32 %v1785, 1.442695
    %v1787 = vpow.pop %v1786
    %v1788 = vsel %vm1781, %v1787, 0.0
    %1789 = vadd.xlane.f32.xlu0 %v1788
    %v1790 = vpop.xlane.xlu0 %1789
    %v1791 = vlog2.pop %v1790
    %v1792 = vmul.f32 %v1791, 0.6931472
    %v1793 = vadd.f32 %v1792, %v1784
    %v1794 = vsub.f32 %v1780, %v1793
    %1795 = vst.msk [vmem:[#allocation11 - $0x5] sm:$0x60] %vm1781, %v1794
    // Predicated region
    $region46: #{gru_model_forward.1} parent=1 // pred_check
      _
    $region47: #{gru_model_forward.1} parent=1 // pred_check_branch
      %1797 = sbr.rel (0) target = $region49
    $region48: #{gru_model_forward.1} parent=1 // pred_region
      %s1799 = ssub.s32 32, 32
      %1800 = vsyncadd [#allocation4], %s1799
      %s1802 = sshll.u32 [#allocation11], 4
      %s1803 = int_to_ptr.vmem [resolvable:$true] %s1802
      %1805 = dma.vmem_to_hbm [thread:$0]  %s1803, 32, %s6, [#allocation4]
    $region49: #{gru_model_forward.1} parent=1 // pred_fallthru
      _
    // Predicated region
    $region50: #{gru_model_forward.1} parent=1 // pred_check
      _
    $region51: #{gru_model_forward.1} parent=1 // pred_check_branch
      %1807 = sbr.rel (0) target = $region53
    $region52: #{gru_model_forward.1} parent=1 // pred_region
      %1808 = dma.done [#allocation4], 32
    $region53: #{gru_model_forward.1} parent=1 // pred_fallthru
      _
    %1809 = vsyncpa [#allocation3], 1
    %1810 = vsyncpa [#allocation6], 1
    %1811 = vsyncpa [#allocation9], 1
    %1812 = vsyncpa [#allocation4], 1

</llo_original>
